<compile_context>
chip_gen: v6e
topology: v6e:2x2x1
jax: 0.10.0
libtpu: 0.0.40
codegen_flags: <defaults>
</compile_context>

<pallas_src>
import functools

import jax
import jax.numpy as jnp
from jax.experimental import pallas as pl
from jax.experimental.pallas import tpu as pltpu


def _ahash_kernel(img_ref, ph_ref, out_ref, acc_ref, *, inv_area, fw):
    # img_ref: (G, 3, tH, W) uint8  -- G images x one row-chunk per grid step
    # ph_ref : (hs, tH) bf16        -- 0/1 row box-pooling mask for this chunk
    # out_ref: (G, hs, hs) int8     -- 0/1 hash bits (written on the last chunk)
    # acc_ref: (G, hs, W)  f32      -- row-pooled partial sums (VMEM scratch)
    k = pl.program_id(1)

    @pl.when(k == 0)
    def _init():
        acc_ref[...] = jnp.zeros_like(acc_ref)

    ph = ph_ref[...]                       # (hs, tH) bf16, 0/1 mask
    n_img = img_ref.shape[0]
    for i in range(n_img):                 # static unroll, G is small
        # uint8 -> f32 via an integer widen (well-supported lowering path).
        r = img_ref[i, 0].astype(jnp.int32).astype(jnp.float32)
        g = img_ref[i, 1].astype(jnp.int32).astype(jnp.float32)
        b = img_ref[i, 2].astype(jnp.int32).astype(jnp.float32)
        # PIL convert('L'): L = (19595*R + 38470*G + 7471*B + 0x8000) >> 16
        gray = jnp.floor(
            (19595.0 * r + 38470.0 * g + 7471.0 * b + 32768.0) * (1.0 / 65536.0)
        )
        # Row pooling on the MXU: bf16 0/1 mask x bf16 gray (integers 0..255,
        # exact in bf16) with f32 accumulation -> exact partial sums.
        acc_ref[i] += jnp.dot(
            ph, gray.astype(jnp.bfloat16), preferred_element_type=jnp.float32
        )

    @pl.when(k == pl.num_programs(1) - 1)
    def _finalize():
        hs = out_ref.shape[1]
        inv_hs2 = 1.0 / (hs * hs)
        for i in range(n_img):
            rp = acc_ref[i]                # (hs, W) exact f32 row sums
            # Column pooling: contiguous lane-block sums (exact in f32).
            sums = jnp.concatenate(
                [
                    jnp.sum(rp[:, t * fw:(t + 1) * fw], axis=1, keepdims=True)
                    for t in range(hs)
                ],
                axis=1,
            )                              # (hs, hs) box sums
            # PIL resize outputs uint8 (rounded + clamped), then .float().
            x = jnp.clip(jnp.round(sums * inv_area), 0.0, 255.0)
            avg = jnp.sum(x) * inv_hs2
            out_ref[i] = (x > avg).astype(jnp.int8)


def _choose_tiles(batch, height, width, block_budget_bytes=4 << 20):
    """Pick (images_per_step, rows_per_step) for the uint8 input block.

    Keeps the double-buffered input block <= ~8 MiB (fits v5e's 16 MiB default
    scoped VMEM, big headroom on v7x's 64 MiB), while batching several small
    images per grid step to amortize per-step overhead.
    """
    per_image = 3 * height * width
    if per_image <= block_budget_bytes:
        g_cap = max(1, block_budget_bytes // per_image)
        g = max(d for d in range(1, batch + 1) if batch % d == 0 and d <= g_cap)
        return g, height
    # Large image: one image per step, tile rows.  rows_per_step must divide H
    # and stay lane-aligned (multiple of 128) for the ph block.
    aligned = [t for t in range(128, height, 128) if height % t == 0]
    fitting = [t for t in aligned if 3 * t * width <= block_budget_bytes]
    if fitting:
        return 1, max(fitting)
    if aligned:
        return 1, min(aligned)
    return 1, height  # no aligned row split exists; fall back to whole image


@functools.partial(
    jax.jit, static_argnames=("hash_size", "images_per_step", "rows_per_step")
)
def ahash_pil(x, hash_size=8, images_per_step=None, rows_per_step=None):
    """x: (B, 3, H, W) uint8 RGB. Returns (B, hash_size, hash_size) bool."""
    B, C, H, W = x.shape
    assert C == 3
    assert x.dtype == jnp.uint8
    assert H % hash_size == 0 and W % hash_size == 0, "use integer box-resize factor"
    fh, fw = H // hash_size, W // hash_size

    g_auto, th_auto = _choose_tiles(B, H, W)
    G = images_per_step if images_per_step is not None else g_auto
    tH = rows_per_step if rows_per_step is not None else th_auto
    assert B % G == 0 and H % tH == 0
    assert tH == H or tH % 128 == 0, "row tile must be lane-aligned"

    # Row box-pooling 0/1 mask in bf16 (halves the MXU feed); the 1/(fh*fw)
    # scale is applied in f32 after pooling so the sums stay exact.
    rows = jnp.arange(H) // fh
    ph = (jnp.arange(hash_size)[:, None] == rows[None, :]).astype(jnp.bfloat16)

    kernel = functools.partial(_ahash_kernel, inv_area=1.0 / (fh * fw), fw=fw)

    in_block_bytes = G * 3 * tH * W  # uint8 image block per pipeline buffer
    vmem_limit = int(min(56 << 20, max(32 << 20, 3 * in_block_bytes)))

    bits = pl.pallas_call(
        kernel,
        out_shape=jax.ShapeDtypeStruct((B, hash_size, hash_size), jnp.int8),
        grid_spec=pltpu.PrefetchScalarGridSpec(
            num_scalar_prefetch=0,
            grid=(B // G, H // tH),
            in_specs=[
                pl.BlockSpec((G, 3, tH, W), lambda i, k: (i, 0, k, 0)),
                pl.BlockSpec((hash_size, tH), lambda i, k: (0, k)),
            ],
            out_specs=pl.BlockSpec(
                (G, hash_size, hash_size), lambda i, k: (i, 0, 0)
            ),
            scratch_shapes=[pltpu.VMEM((G, hash_size, W), jnp.float32)],
        ),
        compiler_params=pltpu.CompilerParams(
            dimension_semantics=("parallel", "arbitrary"),
            vmem_limit_bytes=vmem_limit,
        ),
    )(x, ph)
    return bits != 0


def _reference(x_u8, hash_size=8):
    # Pure-JAX reference of the same math (luma + box resize + mean-threshold).
    xf = x_u8.astype(jnp.float32)
    r, g, b = xf[:, 0], xf[:, 1], xf[:, 2]
    gray = jnp.floor(
        (19595.0 * r + 38470.0 * g + 7471.0 * b + 32768.0) * (1.0 / 65536.0)
    )
    B, H, W = gray.shape
    fh, fw = H // hash_size, W // hash_size
    sums = gray.reshape(B, hash_size, fh, hash_size, fw).sum(axis=(2, 4))
    xs = jnp.clip(jnp.round(sums * (1.0 / (fh * fw))), 0.0, 255.0)
    avg = xs.sum(axis=(1, 2), keepdims=True) * (1.0 / (hash_size * hash_size))
    return xs > avg


if __name__ == "__main__":
    key = jax.random.PRNGKey(0)
    HS = 8

    # Case 1: batch of small images -> several images per grid step (G = B).
    B1, H1, W1 = 4, 64, 64
    x1 = jax.random.randint(key, (B1, 3, H1, W1), 0, 256, dtype=jnp.int32).astype(
        jnp.uint8
    )
    out1 = jax.block_until_ready(ahash_pil(x1, hash_size=HS))
    assert out1.shape == (B1, HS, HS) and out1.dtype == jnp.bool_
    assert bool(jnp.all(out1 == _reference(x1, hash_size=HS)))

    # Case 2: force row tiling (accumulation across H chunks) on larger images.
    B2, H2, W2 = 2, 256, 256
    x2 = jax.random.randint(
        jax.random.fold_in(key, 1), (B2, 3, H2, W2), 0, 256, dtype=jnp.int32
    ).astype(jnp.uint8)
    out2 = jax.block_until_ready(
        ahash_pil(x2, hash_size=HS, images_per_step=1, rows_per_step=128)
    )
    assert out2.shape == (B2, HS, HS) and out2.dtype == jnp.bool_
    assert bool(jnp.all(out2 == _reference(x2, hash_size=HS)))

    print("KERNEL_OK")
</pallas_src>

<mosaic_0001>
module attributes {stable_mosaic.version = 11 : i64} {
  func.func @_ahash_kernel(%arg0: i32, %arg1: i32, %arg2: memref<4x3x64x64xi8, #tpu.memory_space<vmem>>, %arg3: memref<8x64xbf16, #tpu.memory_space<vmem>>, %arg4: memref<4x8x8xi8, #tpu.memory_space<vmem>>, %arg5: memref<4x8x64xf32, #tpu.memory_space<vmem>>) attributes {dimension_semantics = [#tpu.dimension_semantics<parallel>, #tpu.dimension_semantics<arbitrary>], iteration_bounds = array<i64: 1, 1>, scalar_prefetch = 0 : i64, scratch_operands = 1 : i64, tpu.core_type = #tpu.core_type<tc>, window_params = [{transform_indices = @transform_0, window_bounds = array<i64: 4, 3, 64, 64>}, {transform_indices = @transform_1, window_bounds = array<i64: 8, 64>}, {transform_indices = @transform_2, window_bounds = array<i64: 4, 8, 8>}]} {
    %c0_i32 = arith.constant 0 : i32
    %0 = arith.cmpi eq, %arg1, %c0_i32 : i32
    %1 = arith.extui %0 : i1 to i32
    %c0_i32_0 = arith.constant 0 : i32
    %2 = arith.cmpi ne, %1, %c0_i32_0 : i32
    scf.if %2 {
      %cst_96 = arith.constant 0.000000e+00 : f32
      %139 = vector.broadcast %cst_96 : f32 to vector<4x8x64xf32>
      %c0_97 = arith.constant 0 : index
      %c0_98 = arith.constant 0 : index
      %c0_99 = arith.constant 0 : index
      %140 = vector.load %arg5[%c0_97, %c0_98, %c0_99] : memref<4x8x64xf32, #tpu.memory_space<vmem>>, vector<4x8x64xf32>
      tpu.vector_store %arg5[%c0_97, %c0_98, %c0_99], %139 {strides = array<i32>} : memref<4x8x64xf32, #tpu.memory_space<vmem>>, vector<4x8x64xf32>,
    } else {
    }
    %c0 = arith.constant 0 : index
    %c0_1 = arith.constant 0 : index
    %3 = vector.load %arg3[%c0, %c0_1] : memref<8x64xbf16, #tpu.memory_space<vmem>>, vector<8x64xbf16>
    %c0_2 = arith.constant 0 : index
    %c0_3 = arith.constant 0 : index
    %c0_4 = arith.constant 0 : index
    %c0_5 = arith.constant 0 : index
    %4 = vector.load %arg2[%c0_2, %c0_3, %c0_4, %c0_5] : memref<4x3x64x64xi8, #tpu.memory_space<vmem>>, vector<1x1x64x64xi8>
    %5 = vector.shape_cast %4 : vector<1x1x64x64xi8> to vector<64x64xi8>
    %6 = arith.extui %5 : vector<64x64xi8> to vector<64x64xi32>
    %7 = arith.sitofp %6 : vector<64x64xi32> to vector<64x64xf32>
    %c0_6 = arith.constant 0 : index
    %c1 = arith.constant 1 : index
    %c0_7 = arith.constant 0 : index
    %c0_8 = arith.constant 0 : index
    %8 = vector.load %arg2[%c0_6, %c1, %c0_7, %c0_8] : memref<4x3x64x64xi8, #tpu.memory_space<vmem>>, vector<1x1x64x64xi8>
    %9 = vector.shape_cast %8 : vector<1x1x64x64xi8> to vector<64x64xi8>
    %10 = arith.extui %9 : vector<64x64xi8> to vector<64x64xi32>
    %11 = arith.sitofp %10 : vector<64x64xi32> to vector<64x64xf32>
    %c0_9 = arith.constant 0 : index
    %c2 = arith.constant 2 : index
    %c0_10 = arith.constant 0 : index
    %c0_11 = arith.constant 0 : index
    %12 = vector.load %arg2[%c0_9, %c2, %c0_10, %c0_11] : memref<4x3x64x64xi8, #tpu.memory_space<vmem>>, vector<1x1x64x64xi8>
    %13 = vector.shape_cast %12 : vector<1x1x64x64xi8> to vector<64x64xi8>
    %14 = arith.extui %13 : vector<64x64xi8> to vector<64x64xi32>
    %15 = arith.sitofp %14 : vector<64x64xi32> to vector<64x64xf32>
    %cst = arith.constant 1.959500e+04 : f32
    %16 = vector.broadcast %cst : f32 to vector<64x64xf32>
    %17 = arith.mulf %16, %7 : vector<64x64xf32>
    %cst_12 = arith.constant 3.847000e+04 : f32
    %18 = vector.broadcast %cst_12 : f32 to vector<64x64xf32>
    %19 = arith.mulf %18, %11 : vector<64x64xf32>
    %20 = arith.addf %17, %19 : vector<64x64xf32>
    %cst_13 = arith.constant 7.471000e+03 : f32
    %21 = vector.broadcast %cst_13 : f32 to vector<64x64xf32>
    %22 = arith.mulf %21, %15 : vector<64x64xf32>
    %23 = arith.addf %20, %22 : vector<64x64xf32>
    %cst_14 = arith.constant 3.276800e+04 : f32
    %24 = vector.broadcast %cst_14 : f32 to vector<64x64xf32>
    %25 = arith.addf %23, %24 : vector<64x64xf32>
    %cst_15 = arith.constant 1.52587891E-5 : f32
    %26 = vector.broadcast %cst_15 : f32 to vector<64x64xf32>
    %27 = arith.mulf %25, %26 : vector<64x64xf32>
    %28 = math.floor %27 : vector<64x64xf32>
    %c0_16 = arith.constant 0 : index
    %c0_17 = arith.constant 0 : index
    %c0_18 = arith.constant 0 : index
    %29 = vector.load %arg5[%c0_16, %c0_17, %c0_18] : memref<4x8x64xf32, #tpu.memory_space<vmem>>, vector<1x8x64xf32>
    %30 = vector.shape_cast %29 : vector<1x8x64xf32> to vector<8x64xf32>
    %31 = arith.truncf %28 : vector<64x64xf32> to vector<64x64xbf16>
    %cst_19 = arith.constant dense<0.000000e+00> : vector<8x64xf32>
    %32 = tpu.matmul %3, %31, %cst_19 {dimension_numbers = #tpu.dot_dimension_numbers<[1], [0], [0], [1], [0, 0, 1, 1], [], []>} : vector<8x64xbf16>, vector<64x64xbf16>, vector<8x64xf32> -> vector<8x64xf32>
    %33 = arith.addf %30, %32 : vector<8x64xf32>
    %c0_20 = arith.constant 0 : index
    %c0_21 = arith.constant 0 : index
    %c0_22 = arith.constant 0 : index
    %34 = vector.load %arg5[%c0_20, %c0_21, %c0_22] : memref<4x8x64xf32, #tpu.memory_space<vmem>>, vector<1x8x64xf32>
    %35 = vector.shape_cast %34 : vector<1x8x64xf32> to vector<8x64xf32>
    %36 = vector.shape_cast %33 : vector<8x64xf32> to vector<1x8x64xf32>
    tpu.vector_store %arg5[%c0_20, %c0_21, %c0_22], %36 {strides = array<i32>} : memref<4x8x64xf32, #tpu.memory_space<vmem>>, vector<1x8x64xf32>,
    %c1_23 = arith.constant 1 : index
    %c0_24 = arith.constant 0 : index
    %c0_25 = arith.constant 0 : index
    %c0_26 = arith.constant 0 : index
    %37 = vector.load %arg2[%c1_23, %c0_24, %c0_25, %c0_26] : memref<4x3x64x64xi8, #tpu.memory_space<vmem>>, vector<1x1x64x64xi8>
    %38 = vector.shape_cast %37 : vector<1x1x64x64xi8> to vector<64x64xi8>
    %39 = arith.extui %38 : vector<64x64xi8> to vector<64x64xi32>
    %40 = arith.sitofp %39 : vector<64x64xi32> to vector<64x64xf32>
    %c1_27 = arith.constant 1 : index
    %c1_28 = arith.constant 1 : index
    %c0_29 = arith.constant 0 : index
    %c0_30 = arith.constant 0 : index
    %41 = vector.load %arg2[%c1_27, %c1_28, %c0_29, %c0_30] : memref<4x3x64x64xi8, #tpu.memory_space<vmem>>, vector<1x1x64x64xi8>
    %42 = vector.shape_cast %41 : vector<1x1x64x64xi8> to vector<64x64xi8>
    %43 = arith.extui %42 : vector<64x64xi8> to vector<64x64xi32>
    %44 = arith.sitofp %43 : vector<64x64xi32> to vector<64x64xf32>
    %c1_31 = arith.constant 1 : index
    %c2_32 = arith.constant 2 : index
    %c0_33 = arith.constant 0 : index
    %c0_34 = arith.constant 0 : index
    %45 = vector.load %arg2[%c1_31, %c2_32, %c0_33, %c0_34] : memref<4x3x64x64xi8, #tpu.memory_space<vmem>>, vector<1x1x64x64xi8>
    %46 = vector.shape_cast %45 : vector<1x1x64x64xi8> to vector<64x64xi8>
    %47 = arith.extui %46 : vector<64x64xi8> to vector<64x64xi32>
    %48 = arith.sitofp %47 : vector<64x64xi32> to vector<64x64xf32>
    %cst_35 = arith.constant 1.959500e+04 : f32
    %49 = vector.broadcast %cst_35 : f32 to vector<64x64xf32>
    %50 = arith.mulf %49, %40 : vector<64x64xf32>
    %cst_36 = arith.constant 3.847000e+04 : f32
    %51 = vector.broadcast %cst_36 : f32 to vector<64x64xf32>
    %52 = arith.mulf %51, %44 : vector<64x64xf32>
    %53 = arith.addf %50, %52 : vector<64x64xf32>
    %cst_37 = arith.constant 7.471000e+03 : f32
    %54 = vector.broadcast %cst_37 : f32 to vector<64x64xf32>
    %55 = arith.mulf %54, %48 : vector<64x64xf32>
    %56 = arith.addf %53, %55 : vector<64x64xf32>
    %cst_38 = arith.constant 3.276800e+04 : f32
    %57 = vector.broadcast %cst_38 : f32 to vector<64x64xf32>
    %58 = arith.addf %56, %57 : vector<64x64xf32>
    %cst_39 = arith.constant 1.52587891E-5 : f32
    %59 = vector.broadcast %cst_39 : f32 to vector<64x64xf32>
    %60 = arith.mulf %58, %59 : vector<64x64xf32>
    %61 = math.floor %60 : vector<64x64xf32>
    %c1_40 = arith.constant 1 : index
    %c0_41 = arith.constant 0 : index
    %c0_42 = arith.constant 0 : index
    %62 = vector.load %arg5[%c1_40, %c0_41, %c0_42] : memref<4x8x64xf32, #tpu.memory_space<vmem>>, vector<1x8x64xf32>
    %63 = vector.shape_cast %62 : vector<1x8x64xf32> to vector<8x64xf32>
    %64 = arith.truncf %61 : vector<64x64xf32> to vector<64x64xbf16>
    %cst_43 = arith.constant dense<0.000000e+00> : vector<8x64xf32>
    %65 = tpu.matmul %3, %64, %cst_43 {dimension_numbers = #tpu.dot_dimension_numbers<[1], [0], [0], [1], [0, 0, 1, 1], [], []>} : vector<8x64xbf16>, vector<64x64xbf16>, vector<8x64xf32> -> vector<8x64xf32>
    %66 = arith.addf %63, %65 : vector<8x64xf32>
    %c1_44 = arith.constant 1 : index
    %c0_45 = arith.constant 0 : index
    %c0_46 = arith.constant 0 : index
    %67 = vector.load %arg5[%c1_44, %c0_45, %c0_46] : memref<4x8x64xf32, #tpu.memory_space<vmem>>, vector<1x8x64xf32>
    %68 = vector.shape_cast %67 : vector<1x8x64xf32> to vector<8x64xf32>
    %69 = vector.shape_cast %66 : vector<8x64xf32> to vector<1x8x64xf32>
    tpu.vector_store %arg5[%c1_44, %c0_45, %c0_46], %69 {strides = array<i32>} : memref<4x8x64xf32, #tpu.memory_space<vmem>>, vector<1x8x64xf32>,
    %c2_47 = arith.constant 2 : index
    %c0_48 = arith.constant 0 : index
    %c0_49 = arith.constant 0 : index
    %c0_50 = arith.constant 0 : index
    %70 = vector.load %arg2[%c2_47, %c0_48, %c0_49, %c0_50] : memref<4x3x64x64xi8, #tpu.memory_space<vmem>>, vector<1x1x64x64xi8>
    %71 = vector.shape_cast %70 : vector<1x1x64x64xi8> to vector<64x64xi8>
    %72 = arith.extui %71 : vector<64x64xi8> to vector<64x64xi32>
    %73 = arith.sitofp %72 : vector<64x64xi32> to vector<64x64xf32>
    %c2_51 = arith.constant 2 : index
    %c1_52 = arith.constant 1 : index
    %c0_53 = arith.constant 0 : index
    %c0_54 = arith.constant 0 : index
    %74 = vector.load %arg2[%c2_51, %c1_52, %c0_53, %c0_54] : memref<4x3x64x64xi8, #tpu.memory_space<vmem>>, vector<1x1x64x64xi8>
    %75 = vector.shape_cast %74 : vector<1x1x64x64xi8> to vector<64x64xi8>
    %76 = arith.extui %75 : vector<64x64xi8> to vector<64x64xi32>
    %77 = arith.sitofp %76 : vector<64x64xi32> to vector<64x64xf32>
    %c2_55 = arith.constant 2 : index
    %c2_56 = arith.constant 2 : index
    %c0_57 = arith.constant 0 : index
    %c0_58 = arith.constant 0 : index
    %78 = vector.load %arg2[%c2_55, %c2_56, %c0_57, %c0_58] : memref<4x3x64x64xi8, #tpu.memory_space<vmem>>, vector<1x1x64x64xi8>
    %79 = vector.shape_cast %78 : vector<1x1x64x64xi8> to vector<64x64xi8>
    %80 = arith.extui %79 : vector<64x64xi8> to vector<64x64xi32>
    %81 = arith.sitofp %80 : vector<64x64xi32> to vector<64x64xf32>
    %cst_59 = arith.constant 1.959500e+04 : f32
    %82 = vector.broadcast %cst_59 : f32 to vector<64x64xf32>
    %83 = arith.mulf %82, %73 : vector<64x64xf32>
    %cst_60 = arith.constant 3.847000e+04 : f32
    %84 = vector.broadcast %cst_60 : f32 to vector<64x64xf32>
    %85 = arith.mulf %84, %77 : vector<64x64xf32>
    %86 = arith.addf %83, %85 : vector<64x64xf32>
    %cst_61 = arith.constant 7.471000e+03 : f32
    %87 = vector.broadcast %cst_61 : f32 to vector<64x64xf32>
    %88 = arith.mulf %87, %81 : vector<64x64xf32>
    %89 = arith.addf %86, %88 : vector<64x64xf32>
    %cst_62 = arith.constant 3.276800e+04 : f32
    %90 = vector.broadcast %cst_62 : f32 to vector<64x64xf32>
    %91 = arith.addf %89, %90 : vector<64x64xf32>
    %cst_63 = arith.constant 1.52587891E-5 : f32
    %92 = vector.broadcast %cst_63 : f32 to vector<64x64xf32>
    %93 = arith.mulf %91, %92 : vector<64x64xf32>
    %94 = math.floor %93 : vector<64x64xf32>
    %c2_64 = arith.constant 2 : index
    %c0_65 = arith.constant 0 : index
    %c0_66 = arith.constant 0 : index
    %95 = vector.load %arg5[%c2_64, %c0_65, %c0_66] : memref<4x8x64xf32, #tpu.memory_space<vmem>>, vector<1x8x64xf32>
    %96 = vector.shape_cast %95 : vector<1x8x64xf32> to vector<8x64xf32>
    %97 = arith.truncf %94 : vector<64x64xf32> to vector<64x64xbf16>
    %cst_67 = arith.constant dense<0.000000e+00> : vector<8x64xf32>
    %98 = tpu.matmul %3, %97, %cst_67 {dimension_numbers = #tpu.dot_dimension_numbers<[1], [0], [0], [1], [0, 0, 1, 1], [], []>} : vector<8x64xbf16>, vector<64x64xbf16>, vector<8x64xf32> -> vector<8x64xf32>
    %99 = arith.addf %96, %98 : vector<8x64xf32>
    %c2_68 = arith.constant 2 : index
    %c0_69 = arith.constant 0 : index
    %c0_70 = arith.constant 0 : index
    %100 = vector.load %arg5[%c2_68, %c0_69, %c0_70] : memref<4x8x64xf32, #tpu.memory_space<vmem>>, vector<1x8x64xf32>
    %101 = vector.shape_cast %100 : vector<1x8x64xf32> to vector<8x64xf32>
    %102 = vector.shape_cast %99 : vector<8x64xf32> to vector<1x8x64xf32>
    tpu.vector_store %arg5[%c2_68, %c0_69, %c0_70], %102 {strides = array<i32>} : memref<4x8x64xf32, #tpu.memory_space<vmem>>, vector<1x8x64xf32>,
    %c3 = arith.constant 3 : index
    %c0_71 = arith.constant 0 : index
    %c0_72 = arith.constant 0 : index
    %c0_73 = arith.constant 0 : index
    %103 = vector.load %arg2[%c3, %c0_71, %c0_72, %c0_73] : memref<4x3x64x64xi8, #tpu.memory_space<vmem>>, vector<1x1x64x64xi8>
    %104 = vector.shape_cast %103 : vector<1x1x64x64xi8> to vector<64x64xi8>
    %105 = arith.extui %104 : vector<64x64xi8> to vector<64x64xi32>
    %106 = arith.sitofp %105 : vector<64x64xi32> to vector<64x64xf32>
    %c3_74 = arith.constant 3 : index
    %c1_75 = arith.constant 1 : index
    %c0_76 = arith.constant 0 : index
    %c0_77 = arith.constant 0 : index
    %107 = vector.load %arg2[%c3_74, %c1_75, %c0_76, %c0_77] : memref<4x3x64x64xi8, #tpu.memory_space<vmem>>, vector<1x1x64x64xi8>
    %108 = vector.shape_cast %107 : vector<1x1x64x64xi8> to vector<64x64xi8>
    %109 = arith.extui %108 : vector<64x64xi8> to vector<64x64xi32>
    %110 = arith.sitofp %109 : vector<64x64xi32> to vector<64x64xf32>
    %c3_78 = arith.constant 3 : index
    %c2_79 = arith.constant 2 : index
    %c0_80 = arith.constant 0 : index
    %c0_81 = arith.constant 0 : index
    %111 = vector.load %arg2[%c3_78, %c2_79, %c0_80, %c0_81] : memref<4x3x64x64xi8, #tpu.memory_space<vmem>>, vector<1x1x64x64xi8>
    %112 = vector.shape_cast %111 : vector<1x1x64x64xi8> to vector<64x64xi8>
    %113 = arith.extui %112 : vector<64x64xi8> to vector<64x64xi32>
    %114 = arith.sitofp %113 : vector<64x64xi32> to vector<64x64xf32>
    %cst_82 = arith.constant 1.959500e+04 : f32
    %115 = vector.broadcast %cst_82 : f32 to vector<64x64xf32>
    %116 = arith.mulf %115, %106 : vector<64x64xf32>
    %cst_83 = arith.constant 3.847000e+04 : f32
    %117 = vector.broadcast %cst_83 : f32 to vector<64x64xf32>
    %118 = arith.mulf %117, %110 : vector<64x64xf32>
    %119 = arith.addf %116, %118 : vector<64x64xf32>
    %cst_84 = arith.constant 7.471000e+03 : f32
    %120 = vector.broadcast %cst_84 : f32 to vector<64x64xf32>
    %121 = arith.mulf %120, %114 : vector<64x64xf32>
    %122 = arith.addf %119, %121 : vector<64x64xf32>
    %cst_85 = arith.constant 3.276800e+04 : f32
    %123 = vector.broadcast %cst_85 : f32 to vector<64x64xf32>
    %124 = arith.addf %122, %123 : vector<64x64xf32>
    %cst_86 = arith.constant 1.52587891E-5 : f32
    %125 = vector.broadcast %cst_86 : f32 to vector<64x64xf32>
    %126 = arith.mulf %124, %125 : vector<64x64xf32>
    %127 = math.floor %126 : vector<64x64xf32>
    %c3_87 = arith.constant 3 : index
    %c0_88 = arith.constant 0 : index
    %c0_89 = arith.constant 0 : index
    %128 = vector.load %arg5[%c3_87, %c0_88, %c0_89] : memref<4x8x64xf32, #tpu.memory_space<vmem>>, vector<1x8x64xf32>
    %129 = vector.shape_cast %128 : vector<1x8x64xf32> to vector<8x64xf32>
    %130 = arith.truncf %127 : vector<64x64xf32> to vector<64x64xbf16>
    %cst_90 = arith.constant dense<0.000000e+00> : vector<8x64xf32>
    %131 = tpu.matmul %3, %130, %cst_90 {dimension_numbers = #tpu.dot_dimension_numbers<[1], [0], [0], [1], [0, 0, 1, 1], [], []>} : vector<8x64xbf16>, vector<64x64xbf16>, vector<8x64xf32> -> vector<8x64xf32>
    %132 = arith.addf %129, %131 : vector<8x64xf32>
    %c3_91 = arith.constant 3 : index
    %c0_92 = arith.constant 0 : index
    %c0_93 = arith.constant 0 : index
    %133 = vector.load %arg5[%c3_91, %c0_92, %c0_93] : memref<4x8x64xf32, #tpu.memory_space<vmem>>, vector<1x8x64xf32>
    %134 = vector.shape_cast %133 : vector<1x8x64xf32> to vector<8x64xf32>
    %135 = vector.shape_cast %132 : vector<8x64xf32> to vector<1x8x64xf32>
    tpu.vector_store %arg5[%c3_91, %c0_92, %c0_93], %135 {strides = array<i32>} : memref<4x8x64xf32, #tpu.memory_space<vmem>>, vector<1x8x64xf32>,
    %c0_i32_94 = arith.constant 0 : i32
    %136 = arith.cmpi eq, %arg1, %c0_i32_94 : i32
    %137 = arith.extui %136 : i1 to i32
    %c0_i32_95 = arith.constant 0 : i32
    %138 = arith.cmpi ne, %137, %c0_i32_95 : i32
    scf.if %138 {
      %c0_96 = arith.constant 0 : index
      %c0_97 = arith.constant 0 : index
      %c0_98 = arith.constant 0 : index
      %139 = vector.load %arg5[%c0_96, %c0_97, %c0_98] : memref<4x8x64xf32, #tpu.memory_space<vmem>>, vector<1x8x64xf32>
      %140 = vector.shape_cast %139 : vector<1x8x64xf32> to vector<8x64xf32>
      %141 = vector.extract_strided_slice %140 {offsets = [0, 0], sizes = [8, 8], strides = [1, 1]} : vector<8x64xf32> to vector<8x8xf32>
      %cst_99 = arith.constant dense<0.000000e+00> : vector<8xf32>
      %142 = vector.multi_reduction <add>, %141, %cst_99 [1] : vector<8x8xf32> to vector<8xf32>
      %143 = vector.shape_cast %142 : vector<8xf32> to vector<8x1xf32>
      %144 = vector.extract_strided_slice %140 {offsets = [0, 8], sizes = [8, 8], strides = [1, 1]} : vector<8x64xf32> to vector<8x8xf32>
      %cst_100 = arith.constant dense<0.000000e+00> : vector<8xf32>
      %145 = vector.multi_reduction <add>, %144, %cst_100 [1] : vector<8x8xf32> to vector<8xf32>
      %146 = vector.shape_cast %145 : vector<8xf32> to vector<8x1xf32>
      %147 = vector.extract_strided_slice %140 {offsets = [0, 16], sizes = [8, 8], strides = [1, 1]} : vector<8x64xf32> to vector<8x8xf32>
      %cst_101 = arith.constant dense<0.000000e+00> : vector<8xf32>
      %148 = vector.multi_reduction <add>, %147, %cst_101 [1] : vector<8x8xf32> to vector<8xf32>
      %149 = vector.shape_cast %148 : vector<8xf32> to vector<8x1xf32>
      %150 = vector.extract_strided_slice %140 {offsets = [0, 24], sizes = [8, 8], strides = [1, 1]} : vector<8x64xf32> to vector<8x8xf32>
      %cst_102 = arith.constant dense<0.000000e+00> : vector<8xf32>
      %151 = vector.multi_reduction <add>, %150, %cst_102 [1] : vector<8x8xf32> to vector<8xf32>
      %152 = vector.shape_cast %151 : vector<8xf32> to vector<8x1xf32>
      %153 = vector.extract_strided_slice %140 {offsets = [0, 32], sizes = [8, 8], strides = [1, 1]} : vector<8x64xf32> to vector<8x8xf32>
      %cst_103 = arith.constant dense<0.000000e+00> : vector<8xf32>
      %154 = vector.multi_reduction <add>, %153, %cst_103 [1] : vector<8x8xf32> to vector<8xf32>
      %155 = vector.shape_cast %154 : vector<8xf32> to vector<8x1xf32>
      %156 = vector.extract_strided_slice %140 {offsets = [0, 40], sizes = [8, 8], strides = [1, 1]} : vector<8x64xf32> to vector<8x8xf32>
      %cst_104 = arith.constant dense<0.000000e+00> : vector<8xf32>
      %157 = vector.multi_reduction <add>, %156, %cst_104 [1] : vector<8x8xf32> to vector<8xf32>
      %158 = vector.shape_cast %157 : vector<8xf32> to vector<8x1xf32>
      %159 = vector.extract_strided_slice %140 {offsets = [0, 48], sizes = [8, 8], strides = [1, 1]} : vector<8x64xf32> to vector<8x8xf32>
      %cst_105 = arith.constant dense<0.000000e+00> : vector<8xf32>
      %160 = vector.multi_reduction <add>, %159, %cst_105 [1] : vector<8x8xf32> to vector<8xf32>
      %161 = vector.shape_cast %160 : vector<8xf32> to vector<8x1xf32>
      %162 = vector.extract_strided_slice %140 {offsets = [0, 56], sizes = [8, 8], strides = [1, 1]} : vector<8x64xf32> to vector<8x8xf32>
      %cst_106 = arith.constant dense<0.000000e+00> : vector<8xf32>
      %163 = vector.multi_reduction <add>, %162, %cst_106 [1] : vector<8x8xf32> to vector<8xf32>
      %164 = vector.shape_cast %163 : vector<8xf32> to vector<8x1xf32>
      %165 = tpu.concatenate %143, %146, %149, %152, %155, %158, %161, %164 in 1 : vector<8x1xf32>, vector<8x1xf32>, vector<8x1xf32>, vector<8x1xf32>, vector<8x1xf32>, vector<8x1xf32>, vector<8x1xf32>, vector<8x1xf32> -> vector<8x8xf32>
      %cst_107 = arith.constant 1.562500e-02 : f32
      %166 = vector.broadcast %cst_107 : f32 to vector<8x8xf32>
      %167 = arith.mulf %165, %166 : vector<8x8xf32>
      %168 = math.roundeven %167 : vector<8x8xf32>
      %cst_108 = arith.constant 0.000000e+00 : f32
      %cst_109 = arith.constant 2.550000e+02 : f32
      %169 = vector.broadcast %cst_108 : f32 to vector<8x8xf32>
      %170 = arith.maximumf %169, %168 : vector<8x8xf32>
      %171 = vector.broadcast %cst_109 : f32 to vector<8x8xf32>
      %172 = arith.minimumf %171, %170 : vector<8x8xf32>
      %173 = vector.shape_cast %172 : vector<8x8xf32> to vector<1x8x8xf32>
      %cst_110 = arith.constant dense<0.000000e+00> : vector<1xf32>
      %174 = vector.multi_reduction <add>, %173, %cst_110 [1, 2] : vector<1x8x8xf32> to vector<1xf32>
      %175 = vector.shape_cast %174 : vector<1xf32> to vector<1x1x1xf32>
      %176 = vector.extract %175[0, 0, 0] : f32 from vector<1x1x1xf32>
      %cst_111 = arith.constant 1.562500e-02 : f32
      %177 = arith.mulf %176, %cst_111 : f32
      %178 = vector.broadcast %177 : f32 to vector<8x8xf32>
      %179 = arith.cmpf ogt, %172, %178 : vector<8x8xf32>
      %180 = arith.extui %179 : vector<8x8xi1> to vector<8x8xi8>
      %c0_112 = arith.constant 0 : index
      %c0_113 = arith.constant 0 : index
      %c0_114 = arith.constant 0 : index
      %181 = vector.load %arg4[%c0_112, %c0_113, %c0_114] : memref<4x8x8xi8, #tpu.memory_space<vmem>>, vector<1x8x8xi8>
      %182 = vector.shape_cast %181 : vector<1x8x8xi8> to vector<8x8xi8>
      %183 = vector.shape_cast %180 : vector<8x8xi8> to vector<1x8x8xi8>
      tpu.vector_store %arg4[%c0_112, %c0_113, %c0_114], %183 {strides = array<i32>} : memref<4x8x8xi8, #tpu.memory_space<vmem>>, vector<1x8x8xi8>,
      %c1_115 = arith.constant 1 : index
      %c0_116 = arith.constant 0 : index
      %c0_117 = arith.constant 0 : index
      %184 = vector.load %arg5[%c1_115, %c0_116, %c0_117] : memref<4x8x64xf32, #tpu.memory_space<vmem>>, vector<1x8x64xf32>
      %185 = vector.shape_cast %184 : vector<1x8x64xf32> to vector<8x64xf32>
      %186 = vector.extract_strided_slice %185 {offsets = [0, 0], sizes = [8, 8], strides = [1, 1]} : vector<8x64xf32> to vector<8x8xf32>
      %cst_118 = arith.constant dense<0.000000e+00> : vector<8xf32>
      %187 = vector.multi_reduction <add>, %186, %cst_118 [1] : vector<8x8xf32> to vector<8xf32>
      %188 = vector.shape_cast %187 : vector<8xf32> to vector<8x1xf32>
      %189 = vector.extract_strided_slice %185 {offsets = [0, 8], sizes = [8, 8], strides = [1, 1]} : vector<8x64xf32> to vector<8x8xf32>
      %cst_119 = arith.constant dense<0.000000e+00> : vector<8xf32>
      %190 = vector.multi_reduction <add>, %189, %cst_119 [1] : vector<8x8xf32> to vector<8xf32>
      %191 = vector.shape_cast %190 : vector<8xf32> to vector<8x1xf32>
      %192 = vector.extract_strided_slice %185 {offsets = [0, 16], sizes = [8, 8], strides = [1, 1]} : vector<8x64xf32> to vector<8x8xf32>
      %cst_120 = arith.constant dense<0.000000e+00> : vector<8xf32>
      %193 = vector.multi_reduction <add>, %192, %cst_120 [1] : vector<8x8xf32> to vector<8xf32>
      %194 = vector.shape_cast %193 : vector<8xf32> to vector<8x1xf32>
      %195 = vector.extract_strided_slice %185 {offsets = [0, 24], sizes = [8, 8], strides = [1, 1]} : vector<8x64xf32> to vector<8x8xf32>
      %cst_121 = arith.constant dense<0.000000e+00> : vector<8xf32>
      %196 = vector.multi_reduction <add>, %195, %cst_121 [1] : vector<8x8xf32> to vector<8xf32>
      %197 = vector.shape_cast %196 : vector<8xf32> to vector<8x1xf32>
      %198 = vector.extract_strided_slice %185 {offsets = [0, 32], sizes = [8, 8], strides = [1, 1]} : vector<8x64xf32> to vector<8x8xf32>
      %cst_122 = arith.constant dense<0.000000e+00> : vector<8xf32>
      %199 = vector.multi_reduction <add>, %198, %cst_122 [1] : vector<8x8xf32> to vector<8xf32>
      %200 = vector.shape_cast %199 : vector<8xf32> to vector<8x1xf32>
      %201 = vector.extract_strided_slice %185 {offsets = [0, 40], sizes = [8, 8], strides = [1, 1]} : vector<8x64xf32> to vector<8x8xf32>
      %cst_123 = arith.constant dense<0.000000e+00> : vector<8xf32>
      %202 = vector.multi_reduction <add>, %201, %cst_123 [1] : vector<8x8xf32> to vector<8xf32>
      %203 = vector.shape_cast %202 : vector<8xf32> to vector<8x1xf32>
      %204 = vector.extract_strided_slice %185 {offsets = [0, 48], sizes = [8, 8], strides = [1, 1]} : vector<8x64xf32> to vector<8x8xf32>
      %cst_124 = arith.constant dense<0.000000e+00> : vector<8xf32>
      %205 = vector.multi_reduction <add>, %204, %cst_124 [1] : vector<8x8xf32> to vector<8xf32>
      %206 = vector.shape_cast %205 : vector<8xf32> to vector<8x1xf32>
      %207 = vector.extract_strided_slice %185 {offsets = [0, 56], sizes = [8, 8], strides = [1, 1]} : vector<8x64xf32> to vector<8x8xf32>
      %cst_125 = arith.constant dense<0.000000e+00> : vector<8xf32>
      %208 = vector.multi_reduction <add>, %207, %cst_125 [1] : vector<8x8xf32> to vector<8xf32>
      %209 = vector.shape_cast %208 : vector<8xf32> to vector<8x1xf32>
      %210 = tpu.concatenate %188, %191, %194, %197, %200, %203, %206, %209 in 1 : vector<8x1xf32>, vector<8x1xf32>, vector<8x1xf32>, vector<8x1xf32>, vector<8x1xf32>, vector<8x1xf32>, vector<8x1xf32>, vector<8x1xf32> -> vector<8x8xf32>
      %cst_126 = arith.constant 1.562500e-02 : f32
      %211 = vector.broadcast %cst_126 : f32 to vector<8x8xf32>
      %212 = arith.mulf %210, %211 : vector<8x8xf32>
      %213 = math.roundeven %212 : vector<8x8xf32>
      %cst_127 = arith.constant 0.000000e+00 : f32
      %cst_128 = arith.constant 2.550000e+02 : f32
      %214 = vector.broadcast %cst_127 : f32 to vector<8x8xf32>
      %215 = arith.maximumf %214, %213 : vector<8x8xf32>
      %216 = vector.broadcast %cst_128 : f32 to vector<8x8xf32>
      %217 = arith.minimumf %216, %215 : vector<8x8xf32>
      %218 = vector.shape_cast %217 : vector<8x8xf32> to vector<1x8x8xf32>
      %cst_129 = arith.constant dense<0.000000e+00> : vector<1xf32>
      %219 = vector.multi_reduction <add>, %218, %cst_129 [1, 2] : vector<1x8x8xf32> to vector<1xf32>
      %220 = vector.shape_cast %219 : vector<1xf32> to vector<1x1x1xf32>
      %221 = vector.extract %220[0, 0, 0] : f32 from vector<1x1x1xf32>
      %cst_130 = arith.constant 1.562500e-02 : f32
      %222 = arith.mulf %221, %cst_130 : f32
      %223 = vector.broadcast %222 : f32 to vector<8x8xf32>
      %224 = arith.cmpf ogt, %217, %223 : vector<8x8xf32>
      %225 = arith.extui %224 : vector<8x8xi1> to vector<8x8xi8>
      %c1_131 = arith.constant 1 : index
      %c0_132 = arith.constant 0 : index
      %c0_133 = arith.constant 0 : index
      %226 = vector.load %arg4[%c1_131, %c0_132, %c0_133] : memref<4x8x8xi8, #tpu.memory_space<vmem>>, vector<1x8x8xi8>
      %227 = vector.shape_cast %226 : vector<1x8x8xi8> to vector<8x8xi8>
      %228 = vector.shape_cast %225 : vector<8x8xi8> to vector<1x8x8xi8>
      tpu.vector_store %arg4[%c1_131, %c0_132, %c0_133], %228 {strides = array<i32>} : memref<4x8x8xi8, #tpu.memory_space<vmem>>, vector<1x8x8xi8>,
      %c2_134 = arith.constant 2 : index
      %c0_135 = arith.constant 0 : index
      %c0_136 = arith.constant 0 : index
      %229 = vector.load %arg5[%c2_134, %c0_135, %c0_136] : memref<4x8x64xf32, #tpu.memory_space<vmem>>, vector<1x8x64xf32>
      %230 = vector.shape_cast %229 : vector<1x8x64xf32> to vector<8x64xf32>
      %231 = vector.extract_strided_slice %230 {offsets = [0, 0], sizes = [8, 8], strides = [1, 1]} : vector<8x64xf32> to vector<8x8xf32>
      %cst_137 = arith.constant dense<0.000000e+00> : vector<8xf32>
      %232 = vector.multi_reduction <add>, %231, %cst_137 [1] : vector<8x8xf32> to vector<8xf32>
      %233 = vector.shape_cast %232 : vector<8xf32> to vector<8x1xf32>
      %234 = vector.extract_strided_slice %230 {offsets = [0, 8], sizes = [8, 8], strides = [1, 1]} : vector<8x64xf32> to vector<8x8xf32>
      %cst_138 = arith.constant dense<0.000000e+00> : vector<8xf32>
      %235 = vector.multi_reduction <add>, %234, %cst_138 [1] : vector<8x8xf32> to vector<8xf32>
      %236 = vector.shape_cast %235 : vector<8xf32> to vector<8x1xf32>
      %237 = vector.extract_strided_slice %230 {offsets = [0, 16], sizes = [8, 8], strides = [1, 1]} : vector<8x64xf32> to vector<8x8xf32>
      %cst_139 = arith.constant dense<0.000000e+00> : vector<8xf32>
      %238 = vector.multi_reduction <add>, %237, %cst_139 [1] : vector<8x8xf32> to vector<8xf32>
      %239 = vector.shape_cast %238 : vector<8xf32> to vector<8x1xf32>
      %240 = vector.extract_strided_slice %230 {offsets = [0, 24], sizes = [8, 8], strides = [1, 1]} : vector<8x64xf32> to vector<8x8xf32>
      %cst_140 = arith.constant dense<0.000000e+00> : vector<8xf32>
      %241 = vector.multi_reduction <add>, %240, %cst_140 [1] : vector<8x8xf32> to vector<8xf32>
      %242 = vector.shape_cast %241 : vector<8xf32> to vector<8x1xf32>
      %243 = vector.extract_strided_slice %230 {offsets = [0, 32], sizes = [8, 8], strides = [1, 1]} : vector<8x64xf32> to vector<8x8xf32>
      %cst_141 = arith.constant dense<0.000000e+00> : vector<8xf32>
      %244 = vector.multi_reduction <add>, %243, %cst_141 [1] : vector<8x8xf32> to vector<8xf32>
      %245 = vector.shape_cast %244 : vector<8xf32> to vector<8x1xf32>
      %246 = vector.extract_strided_slice %230 {offsets = [0, 40], sizes = [8, 8], strides = [1, 1]} : vector<8x64xf32> to vector<8x8xf32>
      %cst_142 = arith.constant dense<0.000000e+00> : vector<8xf32>
      %247 = vector.multi_reduction <add>, %246, %cst_142 [1] : vector<8x8xf32> to vector<8xf32>
      %248 = vector.shape_cast %247 : vector<8xf32> to vector<8x1xf32>
      %249 = vector.extract_strided_slice %230 {offsets = [0, 48], sizes = [8, 8], strides = [1, 1]} : vector<8x64xf32> to vector<8x8xf32>
      %cst_143 = arith.constant dense<0.000000e+00> : vector<8xf32>
      %250 = vector.multi_reduction <add>, %249, %cst_143 [1] : vector<8x8xf32> to vector<8xf32>
      %251 = vector.shape_cast %250 : vector<8xf32> to vector<8x1xf32>
      %252 = vector.extract_strided_slice %230 {offsets = [0, 56], sizes = [8, 8], strides = [1, 1]} : vector<8x64xf32> to vector<8x8xf32>
      %cst_144 = arith.constant dense<0.000000e+00> : vector<8xf32>
      %253 = vector.multi_reduction <add>, %252, %cst_144 [1] : vector<8x8xf32> to vector<8xf32>
      %254 = vector.shape_cast %253 : vector<8xf32> to vector<8x1xf32>
      %255 = tpu.concatenate %233, %236, %239, %242, %245, %248, %251, %254 in 1 : vector<8x1xf32>, vector<8x1xf32>, vector<8x1xf32>, vector<8x1xf32>, vector<8x1xf32>, vector<8x1xf32>, vector<8x1xf32>, vector<8x1xf32> -> vector<8x8xf32>
      %cst_145 = arith.constant 1.562500e-02 : f32
      %256 = vector.broadcast %cst_145 : f32 to vector<8x8xf32>
      %257 = arith.mulf %255, %256 : vector<8x8xf32>
      %258 = math.roundeven %257 : vector<8x8xf32>
      %cst_146 = arith.constant 0.000000e+00 : f32
      %cst_147 = arith.constant 2.550000e+02 : f32
      %259 = vector.broadcast %cst_146 : f32 to vector<8x8xf32>
      %260 = arith.maximumf %259, %258 : vector<8x8xf32>
      %261 = vector.broadcast %cst_147 : f32 to vector<8x8xf32>
      %262 = arith.minimumf %261, %260 : vector<8x8xf32>
      %263 = vector.shape_cast %262 : vector<8x8xf32> to vector<1x8x8xf32>
      %cst_148 = arith.constant dense<0.000000e+00> : vector<1xf32>
      %264 = vector.multi_reduction <add>, %263, %cst_148 [1, 2] : vector<1x8x8xf32> to vector<1xf32>
      %265 = vector.shape_cast %264 : vector<1xf32> to vector<1x1x1xf32>
      %266 = vector.extract %265[0, 0, 0] : f32 from vector<1x1x1xf32>
      %cst_149 = arith.constant 1.562500e-02 : f32
      %267 = arith.mulf %266, %cst_149 : f32
      %268 = vector.broadcast %267 : f32 to vector<8x8xf32>
      %269 = arith.cmpf ogt, %262, %268 : vector<8x8xf32>
      %270 = arith.extui %269 : vector<8x8xi1> to vector<8x8xi8>
      %c2_150 = arith.constant 2 : index
      %c0_151 = arith.constant 0 : index
      %c0_152 = arith.constant 0 : index
      %271 = vector.load %arg4[%c2_150, %c0_151, %c0_152] : memref<4x8x8xi8, #tpu.memory_space<vmem>>, vector<1x8x8xi8>
      %272 = vector.shape_cast %271 : vector<1x8x8xi8> to vector<8x8xi8>
      %273 = vector.shape_cast %270 : vector<8x8xi8> to vector<1x8x8xi8>
      tpu.vector_store %arg4[%c2_150, %c0_151, %c0_152], %273 {strides = array<i32>} : memref<4x8x8xi8, #tpu.memory_space<vmem>>, vector<1x8x8xi8>,
      %c3_153 = arith.constant 3 : index
      %c0_154 = arith.constant 0 : index
      %c0_155 = arith.constant 0 : index
      %274 = vector.load %arg5[%c3_153, %c0_154, %c0_155] : memref<4x8x64xf32, #tpu.memory_space<vmem>>, vector<1x8x64xf32>
      %275 = vector.shape_cast %274 : vector<1x8x64xf32> to vector<8x64xf32>
      %276 = vector.extract_strided_slice %275 {offsets = [0, 0], sizes = [8, 8], strides = [1, 1]} : vector<8x64xf32> to vector<8x8xf32>
      %cst_156 = arith.constant dense<0.000000e+00> : vector<8xf32>
      %277 = vector.multi_reduction <add>, %276, %cst_156 [1] : vector<8x8xf32> to vector<8xf32>
      %278 = vector.shape_cast %277 : vector<8xf32> to vector<8x1xf32>
      %279 = vector.extract_strided_slice %275 {offsets = [0, 8], sizes = [8, 8], strides = [1, 1]} : vector<8x64xf32> to vector<8x8xf32>
      %cst_157 = arith.constant dense<0.000000e+00> : vector<8xf32>
      %280 = vector.multi_reduction <add>, %279, %cst_157 [1] : vector<8x8xf32> to vector<8xf32>
      %281 = vector.shape_cast %280 : vector<8xf32> to vector<8x1xf32>
      %282 = vector.extract_strided_slice %275 {offsets = [0, 16], sizes = [8, 8], strides = [1, 1]} : vector<8x64xf32> to vector<8x8xf32>
      %cst_158 = arith.constant dense<0.000000e+00> : vector<8xf32>
      %283 = vector.multi_reduction <add>, %282, %cst_158 [1] : vector<8x8xf32> to vector<8xf32>
      %284 = vector.shape_cast %283 : vector<8xf32> to vector<8x1xf32>
      %285 = vector.extract_strided_slice %275 {offsets = [0, 24], sizes = [8, 8], strides = [1, 1]} : vector<8x64xf32> to vector<8x8xf32>
      %cst_159 = arith.constant dense<0.000000e+00> : vector<8xf32>
      %286 = vector.multi_reduction <add>, %285, %cst_159 [1] : vector<8x8xf32> to vector<8xf32>
      %287 = vector.shape_cast %286 : vector<8xf32> to vector<8x1xf32>
      %288 = vector.extract_strided_slice %275 {offsets = [0, 32], sizes = [8, 8], strides = [1, 1]} : vector<8x64xf32> to vector<8x8xf32>
      %cst_160 = arith.constant dense<0.000000e+00> : vector<8xf32>
      %289 = vector.multi_reduction <add>, %288, %cst_160 [1] : vector<8x8xf32> to vector<8xf32>
      %290 = vector.shape_cast %289 : vector<8xf32> to vector<8x1xf32>
      %291 = vector.extract_strided_slice %275 {offsets = [0, 40], sizes = [8, 8], strides = [1, 1]} : vector<8x64xf32> to vector<8x8xf32>
      %cst_161 = arith.constant dense<0.000000e+00> : vector<8xf32>
      %292 = vector.multi_reduction <add>, %291, %cst_161 [1] : vector<8x8xf32> to vector<8xf32>
      %293 = vector.shape_cast %292 : vector<8xf32> to vector<8x1xf32>
      %294 = vector.extract_strided_slice %275 {offsets = [0, 48], sizes = [8, 8], strides = [1, 1]} : vector<8x64xf32> to vector<8x8xf32>
      %cst_162 = arith.constant dense<0.000000e+00> : vector<8xf32>
      %295 = vector.multi_reduction <add>, %294, %cst_162 [1] : vector<8x8xf32> to vector<8xf32>
      %296 = vector.shape_cast %295 : vector<8xf32> to vector<8x1xf32>
      %297 = vector.extract_strided_slice %275 {offsets = [0, 56], sizes = [8, 8], strides = [1, 1]} : vector<8x64xf32> to vector<8x8xf32>
      %cst_163 = arith.constant dense<0.000000e+00> : vector<8xf32>
      %298 = vector.multi_reduction <add>, %297, %cst_163 [1] : vector<8x8xf32> to vector<8xf32>
      %299 = vector.shape_cast %298 : vector<8xf32> to vector<8x1xf32>
      %300 = tpu.concatenate %278, %281, %284, %287, %290, %293, %296, %299 in 1 : vector<8x1xf32>, vector<8x1xf32>, vector<8x1xf32>, vector<8x1xf32>, vector<8x1xf32>, vector<8x1xf32>, vector<8x1xf32>, vector<8x1xf32> -> vector<8x8xf32>
      %cst_164 = arith.constant 1.562500e-02 : f32
      %301 = vector.broadcast %cst_164 : f32 to vector<8x8xf32>
      %302 = arith.mulf %300, %301 : vector<8x8xf32>
      %303 = math.roundeven %302 : vector<8x8xf32>
      %cst_165 = arith.constant 0.000000e+00 : f32
      %cst_166 = arith.constant 2.550000e+02 : f32
      %304 = vector.broadcast %cst_165 : f32 to vector<8x8xf32>
      %305 = arith.maximumf %304, %303 : vector<8x8xf32>
      %306 = vector.broadcast %cst_166 : f32 to vector<8x8xf32>
      %307 = arith.minimumf %306, %305 : vector<8x8xf32>
      %308 = vector.shape_cast %307 : vector<8x8xf32> to vector<1x8x8xf32>
      %cst_167 = arith.constant dense<0.000000e+00> : vector<1xf32>
      %309 = vector.multi_reduction <add>, %308, %cst_167 [1, 2] : vector<1x8x8xf32> to vector<1xf32>
      %310 = vector.shape_cast %309 : vector<1xf32> to vector<1x1x1xf32>
      %311 = vector.extract %310[0, 0, 0] : f32 from vector<1x1x1xf32>
      %cst_168 = arith.constant 1.562500e-02 : f32
      %312 = arith.mulf %311, %cst_168 : f32
      %313 = vector.broadcast %312 : f32 to vector<8x8xf32>
      %314 = arith.cmpf ogt, %307, %313 : vector<8x8xf32>
      %315 = arith.extui %314 : vector<8x8xi1> to vector<8x8xi8>
      %c3_169 = arith.constant 3 : index
      %c0_170 = arith.constant 0 : index
      %c0_171 = arith.constant 0 : index
      %316 = vector.load %arg4[%c3_169, %c0_170, %c0_171] : memref<4x8x8xi8, #tpu.memory_space<vmem>>, vector<1x8x8xi8>
      %317 = vector.shape_cast %316 : vector<1x8x8xi8> to vector<8x8xi8>
      %318 = vector.shape_cast %315 : vector<8x8xi8> to vector<1x8x8xi8>
      tpu.vector_store %arg4[%c3_169, %c0_170, %c0_171], %318 {strides = array<i32>} : memref<4x8x8xi8, #tpu.memory_space<vmem>>, vector<1x8x8xi8>,
    } else {
    }
    return
  }
  func.func @transform_0(%arg0: i32, %arg1: i32) -> (i32, i32, i32, i32) {
    %c0_i32 = arith.constant 0 : i32
    %c0_i32_0 = arith.constant 0 : i32
    %c0_i32_1 = arith.constant 0 : i32
    return %arg0, %c0_i32, %arg1, %c0_i32_0 : i32, i32, i32, i32
  }
  func.func @transform_1(%arg0: i32, %arg1: i32) -> (i32, i32) {
    %c0_i32 = arith.constant 0 : i32
    %c0_i32_0 = arith.constant 0 : i32
    return %c0_i32, %arg1 : i32, i32
  }
  func.func @transform_2(%arg0: i32, %arg1: i32) -> (i32, i32, i32) {
    %c0_i32 = arith.constant 0 : i32
    %c0_i32_0 = arith.constant 0 : i32
    %c0_i32_1 = arith.constant 0 : i32
    return %arg0, %c0_i32, %c0_i32_0 : i32, i32, i32
  }
}

</mosaic_0001>

<llo_original>
// kernel: ahash_pil.1
$region0: #{ahash_pil.1}
  #allocation0 [shape = 'u32[]', space=smem, size = 0x4, offset = 0x4, fixed_abs, tag = 'smem constant byte address 0x4 - core index']
  #allocation1 [shape = 'u32[144,128]{1,0:T(1,128)}', space=vmem, size = 0x12000, scoped, tag = 'internal scratch']
  #allocation2 [shape = 'f32[4,8,64]{2,1,0:T(8,128)}', space=vmem, size = 0x4000, scoped, tag = 'scratch operand']
  %s0 = inlined_call_operand.hbm [shape: u8[4,3,64,64], index: 0, kind: input, shape index: {}]
  %s1 = inlined_call_operand.vmem [shape: bf16[8,64], index: 1, kind: input, shape index: {}]
  %s2 = inlined_call_operand.vmem [shape: s8[4,8,8], index: 2, kind: output, shape index: {}]
  %s3 = sld [smem:[#allocation0]]
  $region30: #{ahash_pil.1} parent=0
    _
  %s5 = ssub.s32 1, %s3
  %s6 = scalar_select 0, %s5, %s3
  $region1: #{ahash_pil.1} parent=0
    #allocation3 [shape = 'u8[98304]{0}', space=vmem, size = 0x18000, scoped, tag = 'input window, operand 0, single buffered']
    #allocation4 [shape = 's32[1]{0}', space=sflag, size = 0x4, scoped, tag = 'scoped memory for ahash_pil.1']
    %7 = vsyncpa [#allocation4], 0
    // Predicated region
    $region2: #{ahash_pil.1} parent=1 // pred_check
      _
    $region3: #{ahash_pil.1} parent=1 // pred_check_branch
      %9 = sbr.rel (0) target = $region5
    $region4: #{ahash_pil.1} parent=1 // pred_region
      %s11 = ssub.s32 3072, 3072
      %12 = vsyncadd [#allocation4], %s11
      %s13 = sshll.u32 [#allocation3], 4
      %s14 = int_to_ptr.vmem [resolvable:$true] %s13
      %19 = dma.hbm_to_vmem [thread:$0]  %s0, 3072, %s14, [#allocation4], 128, 128, 8
    $region5: #{ahash_pil.1} parent=1 // pred_fallthru
      _
    // Predicated region
    $region6: #{ahash_pil.1} parent=1 // pred_check
      _
    $region7: #{ahash_pil.1} parent=1 // pred_check_branch
      %21 = sbr.rel (0) target = $region9
    $region8: #{ahash_pil.1} parent=1 // pred_region
      _
    $region9: #{ahash_pil.1} parent=1 // pred_fallthru
      _
    // Predicated region
    $region10: #{ahash_pil.1} parent=1 // pred_check
      _
    $region11: #{ahash_pil.1} parent=1 // pred_check_branch
      %23 = sbr.rel (0) target = $region13
    $region12: #{ahash_pil.1} parent=1 // pred_region
      %24 = dma.done [#allocation4], 3072
    $region13: #{ahash_pil.1} parent=1 // pred_fallthru
      _
    %p28 = scmp.eq.s32.totalorder 0, 0
    // Predicated region
    $region14: #{ahash_pil.1} parent=1 // pred_check
      %p29 = pneg %p28
    $region15: #{ahash_pil.1} parent=1 // pred_check_branch
      %31 = sbr.rel (%p29) target = $region17
    $region16: #{ahash_pil.1} parent=1 // pred_region
      %vm32 = vcmask 523264
      %33 = vst.msk [vmem:[#allocation2] sm:$0xff] %vm32, 0.0
      %34 = vst.msk [vmem:[#allocation2 + $0x8] sm:$0xff] %vm32, 0.0
      %35 = vst.msk [vmem:[#allocation2 + $0x10] sm:$0xff] %vm32, 0.0
      %36 = vst.msk [vmem:[#allocation2 + $0x18] sm:$0xff] %vm32, 0.0
    $region17: #{ahash_pil.1} parent=1 // pred_fallthru
      _
    %v37 = vld [vmem:[%s1] sm:$0xf]
    %v38 = vld [vmem:[#allocation3] sm:$0xff]
    %v39 = vld [vmem:[#allocation3 + $0x8] sm:$0xff]
    %v40 = vunpack.c.0.s8 %v38
    %v41 = vunpack.c.1.s8 %v38
    %v42 = vunpack.c.2.s8 %v38
    %v43 = vunpack.c.3.s8 %v38
    %v44 = vunpack.c.0.s8 %v39
    %v45 = vunpack.c.1.s8 %v39
    %v46 = vunpack.c.2.s8 %v39
    %v47 = vunpack.c.3.s8 %v39
    %v48 = vand.u32 %v40, 255
    %v49 = vand.u32 %v41, 255
    %v50 = vand.u32 %v42, 255
    %v51 = vand.u32 %v43, 255
    %v52 = vand.u32 %v44, 255
    %v53 = vand.u32 %v45, 255
    %v54 = vand.u32 %v46, 255
    %v55 = vand.u32 %v47, 255
    %v56 = vcvt.s32.f32 %v48
    %v57 = vcvt.s32.f32 %v49
    %v58 = vcvt.s32.f32 %v50
    %v59 = vcvt.s32.f32 %v51
    %v60 = vcvt.s32.f32 %v52
    %v61 = vcvt.s32.f32 %v53
    %v62 = vcvt.s32.f32 %v54
    %v63 = vcvt.s32.f32 %v55
    %s64 = scalar_lea.vmem [#allocation3], 16
    %v65 = vld [vmem:[%s64] sm:$0xff]
    %v66 = vld [vmem:[%s64 + $0x8] sm:$0xff]
    %v67 = vunpack.c.0.s8 %v65
    %v68 = vunpack.c.1.s8 %v65
    %v69 = vunpack.c.2.s8 %v65
    %v70 = vunpack.c.3.s8 %v65
    %v71 = vunpack.c.0.s8 %v66
    %v72 = vunpack.c.1.s8 %v66
    %v73 = vunpack.c.2.s8 %v66
    %v74 = vunpack.c.3.s8 %v66
    %v75 = vand.u32 %v67, 255
    %v76 = vand.u32 %v68, 255
    %v77 = vand.u32 %v69, 255
    %v78 = vand.u32 %v70, 255
    %v79 = vand.u32 %v71, 255
    %v80 = vand.u32 %v72, 255
    %v81 = vand.u32 %v73, 255
    %v82 = vand.u32 %v74, 255
    %v83 = vcvt.s32.f32 %v75
    %v84 = vcvt.s32.f32 %v76
    %v85 = vcvt.s32.f32 %v77
    %v86 = vcvt.s32.f32 %v78
    %v87 = vcvt.s32.f32 %v79
    %v88 = vcvt.s32.f32 %v80
    %v89 = vcvt.s32.f32 %v81
    %v90 = vcvt.s32.f32 %v82
    %s91 = scalar_lea.vmem [#allocation3], 32
    %v92 = vld [vmem:[%s91] sm:$0xff]
    %v93 = vld [vmem:[%s91 + $0x8] sm:$0xff]
    %v94 = vunpack.c.0.s8 %v92
    %v95 = vunpack.c.1.s8 %v92
    %v96 = vunpack.c.2.s8 %v92
    %v97 = vunpack.c.3.s8 %v92
    %v98 = vunpack.c.0.s8 %v93
    %v99 = vunpack.c.1.s8 %v93
    %v100 = vunpack.c.2.s8 %v93
    %v101 = vunpack.c.3.s8 %v93
    %v102 = vand.u32 %v94, 255
    %v103 = vand.u32 %v95, 255
    %v104 = vand.u32 %v96, 255
    %v105 = vand.u32 %v97, 255
    %v106 = vand.u32 %v98, 255
    %v107 = vand.u32 %v99, 255
    %v108 = vand.u32 %v100, 255
    %v109 = vand.u32 %v101, 255
    %v110 = vcvt.s32.f32 %v102
    %v111 = vcvt.s32.f32 %v103
    %v112 = vcvt.s32.f32 %v104
    %v113 = vcvt.s32.f32 %v105
    %v114 = vcvt.s32.f32 %v106
    %v115 = vcvt.s32.f32 %v107
    %v116 = vcvt.s32.f32 %v108
    %v117 = vcvt.s32.f32 %v109
    %v118 = vmul.f32 %v56, 19595.0
    %v119 = vmul.f32 %v57, 19595.0
    %v120 = vmul.f32 %v58, 19595.0
    %v121 = vmul.f32 %v59, 19595.0
    %v122 = vmul.f32 %v60, 19595.0
    %v123 = vmul.f32 %v61, 19595.0
    %v124 = vmul.f32 %v62, 19595.0
    %v125 = vmul.f32 %v63, 19595.0
    %v126 = vmul.f32 %v83, 38470.0
    %v127 = vmul.f32 %v84, 38470.0
    %v128 = vmul.f32 %v85, 38470.0
    %v129 = vmul.f32 %v86, 38470.0
    %v130 = vmul.f32 %v87, 38470.0
    %v131 = vmul.f32 %v88, 38470.0
    %v132 = vmul.f32 %v89, 38470.0
    %v133 = vmul.f32 %v90, 38470.0
    %v134 = vadd.f32 %v118, %v126
    %v135 = vadd.f32 %v119, %v127
    %v136 = vadd.f32 %v120, %v128
    %v137 = vadd.f32 %v121, %v129
    %v138 = vadd.f32 %v122, %v130
    %v139 = vadd.f32 %v123, %v131
    %v140 = vadd.f32 %v124, %v132
    %v141 = vadd.f32 %v125, %v133
    %v142 = vmul.f32 %v110, 7471.0
    %v143 = vmul.f32 %v111, 7471.0
    %v144 = vmul.f32 %v112, 7471.0
    %v145 = vmul.f32 %v113, 7471.0
    %v146 = vmul.f32 %v114, 7471.0
    %v147 = vmul.f32 %v115, 7471.0
    %v148 = vmul.f32 %v116, 7471.0
    %v149 = vmul.f32 %v117, 7471.0
    %v150 = vadd.f32 %v134, %v142
    %v151 = vadd.f32 %v135, %v143
    %v152 = vadd.f32 %v136, %v144
    %v153 = vadd.f32 %v137, %v145
    %v154 = vadd.f32 %v138, %v146
    %v155 = vadd.f32 %v139, %v147
    %v156 = vadd.f32 %v140, %v148
    %v157 = vadd.f32 %v141, %v149
    %v158 = vadd.f32 %v150, 32768.0
    %v159 = vadd.f32 %v151, 32768.0
    %v160 = vadd.f32 %v152, 32768.0
    %v161 = vadd.f32 %v153, 32768.0
    %v162 = vadd.f32 %v154, 32768.0
    %v163 = vadd.f32 %v155, 32768.0
    %v164 = vadd.f32 %v156, 32768.0
    %v165 = vadd.f32 %v157, 32768.0
    %v166 = vmul.f32 %v158, 1.5258789e-05
    %v167 = vmul.f32 %v159, 1.5258789e-05
    %v168 = vmul.f32 %v160, 1.5258789e-05
    %v169 = vmul.f32 %v161, 1.5258789e-05
    %v170 = vmul.f32 %v162, 1.5258789e-05
    %v171 = vmul.f32 %v163, 1.5258789e-05
    %v172 = vmul.f32 %v164, 1.5258789e-05
    %v173 = vmul.f32 %v165, 1.5258789e-05
    %v174 = vfloor.f32 %v166
    %v175 = vfloor.f32 %v167
    %v176 = vfloor.f32 %v168
    %v177 = vfloor.f32 %v169
    %v178 = vfloor.f32 %v170
    %v179 = vfloor.f32 %v171
    %v180 = vfloor.f32 %v172
    %v181 = vfloor.f32 %v173
    %v182 = vld [vmem:[#allocation2] sm:$0xff]
    %v183 = vpack.c.bf16 %v175, %v174
    %v184 = vpack.c.bf16 %v177, %v176
    %v185 = vpack.c.bf16 %v179, %v178
    %v186 = vpack.c.bf16 %v181, %v180
    %vm187 = vcmask 523264
    %v189 = vsel %vm187, %v37, 0
    %191 = vmatprep.subr.bf16.mxu0 0
    %192 = vmatpush1.bf16.msra.mxu0 0
    %193 = vmatprep.subr.bf16.mxu0 0
    %194 = vmatpush1.bf16.msra.mxu0 0
    %195 = vmatprep.subr.bf16.mxu0 0
    %196 = vmatpush1.bf16.msra.mxu0 0
    %197 = vmatprep.subr.bf16.mxu0 0
    %198 = vmatpush1.bf16.msra.mxu0 0
    %199 = vmatprep.subr.bf16.mxu0 0
    %200 = vmatpush1.bf16.msra.mxu0 %v186
    %201 = vmatprep.subr.bf16.mxu0 0
    %202 = vmatpush1.bf16.msra.mxu0 %v185
    %203 = vmatprep.subr.bf16.mxu0 0
    %204 = vmatpush1.bf16.msra.mxu0 %v184
    %205 = vmatprep.subr.bf16.mxu0 0
    %206 = vmatpush1.bf16.msra.mxu0 %v183
    %207 = vmatprep.subr.bf16.mxu0 0
    %208 = vmatpush2.bf16.msra.mxu0 0
    %209 = vmatprep.subr.bf16.mxu0 0
    %210 = vmatpush2.bf16.msra.mxu0 0
    %211 = vmatprep.subr.bf16.mxu0 0
    %212 = vmatpush2.bf16.msra.mxu0 0
    %213 = vmatprep.subr.bf16.mxu0 0
    %214 = vmatpush2.bf16.msra.mxu0 0
    %215 = vmatprep.subr.bf16.mxu0 0
    %216 = vmatpush2.bf16.msra.mxu0 0
    %217 = vmatprep.subr.bf16.mxu0 0
    %218 = vmatpush2.bf16.msra.mxu0 0
    %219 = vmatprep.subr.bf16.mxu0 0
    %220 = vmatpush2.bf16.msra.mxu0 0
    %221 = vmatprep.subr.bf16.mxu0 0
    %222 = vmatpush2.bf16.msra.mxu0 0
    %223 = vmatprep.mubr.bf16.mxu0 0
    %224 = vmatmul.mubr.bf16.gmra.mxu0 %v189
    %v225 = vpop.f32.mrf.mxu0
    %v226 = vadd.f32 0.0, %v225
    %v227 = vpop.f32.mrf.mxu0
    %v228 = vpop.f32.mrf.mxu0
    %v229 = vpop.f32.mrf.mxu0
    %230 = vdwg.mxu0
    %v231 = vadd.f32 %v182, %v226
    %232 = vst.msk [vmem:[#allocation2] sm:$0xff] %vm187, %v231
    %s233 = scalar_lea.vmem [#allocation3], 48
    %v234 = vld [vmem:[%s233] sm:$0xff]
    %v235 = vld [vmem:[%s233 + $0x8] sm:$0xff]
    %v236 = vunpack.c.0.s8 %v234
    %v237 = vunpack.c.1.s8 %v234
    %v238 = vunpack.c.2.s8 %v234
    %v239 = vunpack.c.3.s8 %v234
    %v240 = vunpack.c.0.s8 %v235
    %v241 = vunpack.c.1.s8 %v235
    %v242 = vunpack.c.2.s8 %v235
    %v243 = vunpack.c.3.s8 %v235
    %v244 = vand.u32 %v236, 255
    %v245 = vand.u32 %v237, 255
    %v246 = vand.u32 %v238, 255
    %v247 = vand.u32 %v239, 255
    %v248 = vand.u32 %v240, 255
    %v249 = vand.u32 %v241, 255
    %v250 = vand.u32 %v242, 255
    %v251 = vand.u32 %v243, 255
    %v252 = vcvt.s32.f32 %v244
    %v253 = vcvt.s32.f32 %v245
    %v254 = vcvt.s32.f32 %v246
    %v255 = vcvt.s32.f32 %v247
    %v256 = vcvt.s32.f32 %v248
    %v257 = vcvt.s32.f32 %v249
    %v258 = vcvt.s32.f32 %v250
    %v259 = vcvt.s32.f32 %v251
    %s260 = scalar_lea.vmem [#allocation3], 64
    %v261 = vld [vmem:[%s260] sm:$0xff]
    %v262 = vld [vmem:[%s260 + $0x8] sm:$0xff]
    %v263 = vunpack.c.0.s8 %v261
    %v264 = vunpack.c.1.s8 %v261
    %v265 = vunpack.c.2.s8 %v261
    %v266 = vunpack.c.3.s8 %v261
    %v267 = vunpack.c.0.s8 %v262
    %v268 = vunpack.c.1.s8 %v262
    %v269 = vunpack.c.2.s8 %v262
    %v270 = vunpack.c.3.s8 %v262
    %v271 = vand.u32 %v263, 255
    %v272 = vand.u32 %v264, 255
    %v273 = vand.u32 %v265, 255
    %v274 = vand.u32 %v266, 255
    %v275 = vand.u32 %v267, 255
    %v276 = vand.u32 %v268, 255
    %v277 = vand.u32 %v269, 255
    %v278 = vand.u32 %v270, 255
    %v279 = vcvt.s32.f32 %v271
    %v280 = vcvt.s32.f32 %v272
    %v281 = vcvt.s32.f32 %v273
    %v282 = vcvt.s32.f32 %v274
    %v283 = vcvt.s32.f32 %v275
    %v284 = vcvt.s32.f32 %v276
    %v285 = vcvt.s32.f32 %v277
    %v286 = vcvt.s32.f32 %v278
    %s287 = scalar_lea.vmem [#allocation3], 80
    %v288 = vld [vmem:[%s287] sm:$0xff]
    %v289 = vld [vmem:[%s287 + $0x8] sm:$0xff]
    %v290 = vunpack.c.0.s8 %v288
    %v291 = vunpack.c.1.s8 %v288
    %v292 = vunpack.c.2.s8 %v288
    %v293 = vunpack.c.3.s8 %v288
    %v294 = vunpack.c.0.s8 %v289
    %v295 = vunpack.c.1.s8 %v289
    %v296 = vunpack.c.2.s8 %v289
    %v297 = vunpack.c.3.s8 %v289
    %v298 = vand.u32 %v290, 255
    %v299 = vand.u32 %v291, 255
    %v300 = vand.u32 %v292, 255
    %v301 = vand.u32 %v293, 255
    %v302 = vand.u32 %v294, 255
    %v303 = vand.u32 %v295, 255
    %v304 = vand.u32 %v296, 255
    %v305 = vand.u32 %v297, 255
    %v306 = vcvt.s32.f32 %v298
    %v307 = vcvt.s32.f32 %v299
    %v308 = vcvt.s32.f32 %v300
    %v309 = vcvt.s32.f32 %v301
    %v310 = vcvt.s32.f32 %v302
    %v311 = vcvt.s32.f32 %v303
    %v312 = vcvt.s32.f32 %v304
    %v313 = vcvt.s32.f32 %v305
    %v314 = vmul.f32 %v252, 19595.0
    %v315 = vmul.f32 %v253, 19595.0
    %v316 = vmul.f32 %v254, 19595.0
    %v317 = vmul.f32 %v255, 19595.0
    %v318 = vmul.f32 %v256, 19595.0
    %v319 = vmul.f32 %v257, 19595.0
    %v320 = vmul.f32 %v258, 19595.0
    %v321 = vmul.f32 %v259, 19595.0
    %v322 = vmul.f32 %v279, 38470.0
    %v323 = vmul.f32 %v280, 38470.0
    %v324 = vmul.f32 %v281, 38470.0
    %v325 = vmul.f32 %v282, 38470.0
    %v326 = vmul.f32 %v283, 38470.0
    %v327 = vmul.f32 %v284, 38470.0
    %v328 = vmul.f32 %v285, 38470.0
    %v329 = vmul.f32 %v286, 38470.0
    %v330 = vadd.f32 %v314, %v322
    %v331 = vadd.f32 %v315, %v323
    %v332 = vadd.f32 %v316, %v324
    %v333 = vadd.f32 %v317, %v325
    %v334 = vadd.f32 %v318, %v326
    %v335 = vadd.f32 %v319, %v327
    %v336 = vadd.f32 %v320, %v328
    %v337 = vadd.f32 %v321, %v329
    %v338 = vmul.f32 %v306, 7471.0
    %v339 = vmul.f32 %v307, 7471.0
    %v340 = vmul.f32 %v308, 7471.0
    %v341 = vmul.f32 %v309, 7471.0
    %v342 = vmul.f32 %v310, 7471.0
    %v343 = vmul.f32 %v311, 7471.0
    %v344 = vmul.f32 %v312, 7471.0
    %v345 = vmul.f32 %v313, 7471.0
    %v346 = vadd.f32 %v330, %v338
    %v347 = vadd.f32 %v331, %v339
    %v348 = vadd.f32 %v332, %v340
    %v349 = vadd.f32 %v333, %v341
    %v350 = vadd.f32 %v334, %v342
    %v351 = vadd.f32 %v335, %v343
    %v352 = vadd.f32 %v336, %v344
    %v353 = vadd.f32 %v337, %v345
    %v354 = vadd.f32 %v346, 32768.0
    %v355 = vadd.f32 %v347, 32768.0
    %v356 = vadd.f32 %v348, 32768.0
    %v357 = vadd.f32 %v349, 32768.0
    %v358 = vadd.f32 %v350, 32768.0
    %v359 = vadd.f32 %v351, 32768.0
    %v360 = vadd.f32 %v352, 32768.0
    %v361 = vadd.f32 %v353, 32768.0
    %v362 = vmul.f32 %v354, 1.5258789e-05
    %v363 = vmul.f32 %v355, 1.5258789e-05
    %v364 = vmul.f32 %v356, 1.5258789e-05
    %v365 = vmul.f32 %v357, 1.5258789e-05
    %v366 = vmul.f32 %v358, 1.5258789e-05
    %v367 = vmul.f32 %v359, 1.5258789e-05
    %v368 = vmul.f32 %v360, 1.5258789e-05
    %v369 = vmul.f32 %v361, 1.5258789e-05
    %v370 = vfloor.f32 %v362
    %v371 = vfloor.f32 %v363
    %v372 = vfloor.f32 %v364
    %v373 = vfloor.f32 %v365
    %v374 = vfloor.f32 %v366
    %v375 = vfloor.f32 %v367
    %v376 = vfloor.f32 %v368
    %v377 = vfloor.f32 %v369
    %s378 = scalar_lea.vmem [#allocation2], 8
    %v379 = vld [vmem:[%s378] sm:$0xff]
    %v380 = vpack.c.bf16 %v371, %v370
    %v381 = vpack.c.bf16 %v373, %v372
    %v382 = vpack.c.bf16 %v375, %v374
    %v383 = vpack.c.bf16 %v377, %v376
    %384 = vmatprep.subr.bf16.mxu0 0
    %385 = vmatpush1.bf16.msra.mxu0 0
    %386 = vmatprep.subr.bf16.mxu0 0
    %387 = vmatpush1.bf16.msra.mxu0 0
    %388 = vmatprep.subr.bf16.mxu0 0
    %389 = vmatpush1.bf16.msra.mxu0 0
    %390 = vmatprep.subr.bf16.mxu0 0
    %391 = vmatpush1.bf16.msra.mxu0 0
    %392 = vmatprep.subr.bf16.mxu0 0
    %393 = vmatpush1.bf16.msra.mxu0 %v383
    %394 = vmatprep.subr.bf16.mxu0 0
    %395 = vmatpush1.bf16.msra.mxu0 %v382
    %396 = vmatprep.subr.bf16.mxu0 0
    %397 = vmatpush1.bf16.msra.mxu0 %v381
    %398 = vmatprep.subr.bf16.mxu0 0
    %399 = vmatpush1.bf16.msra.mxu0 %v380
    %400 = vmatprep.subr.bf16.mxu0 0
    %401 = vmatpush2.bf16.msra.mxu0 0
    %402 = vmatprep.subr.bf16.mxu0 0
    %403 = vmatpush2.bf16.msra.mxu0 0
    %404 = vmatprep.subr.bf16.mxu0 0
    %405 = vmatpush2.bf16.msra.mxu0 0
    %406 = vmatprep.subr.bf16.mxu0 0
    %407 = vmatpush2.bf16.msra.mxu0 0
    %408 = vmatprep.subr.bf16.mxu0 0
    %409 = vmatpush2.bf16.msra.mxu0 0
    %410 = vmatprep.subr.bf16.mxu0 0
    %411 = vmatpush2.bf16.msra.mxu0 0
    %412 = vmatprep.subr.bf16.mxu0 0
    %413 = vmatpush2.bf16.msra.mxu0 0
    %414 = vmatprep.subr.bf16.mxu0 0
    %415 = vmatpush2.bf16.msra.mxu0 0
    %416 = vmatprep.mubr.bf16.mxu0 0
    %417 = vmatmul.mubr.bf16.gmra.mxu0 %v189
    %v418 = vpop.f32.mrf.mxu0
    %v419 = vadd.f32 0.0, %v418
    %v420 = vpop.f32.mrf.mxu0
    %v421 = vpop.f32.mrf.mxu0
    %v422 = vpop.f32.mrf.mxu0
    %423 = vdwg.mxu0
    %v424 = vadd.f32 %v379, %v419
    %425 = vst.msk [vmem:[%s378] sm:$0xff] %vm187, %v424
    %s426 = scalar_lea.vmem [#allocation3], 96
    %v427 = vld [vmem:[%s426] sm:$0xff]
    %v428 = vld [vmem:[%s426 + $0x8] sm:$0xff]
    %v429 = vunpack.c.0.s8 %v427
    %v430 = vunpack.c.1.s8 %v427
    %v431 = vunpack.c.2.s8 %v427
    %v432 = vunpack.c.3.s8 %v427
    %v433 = vunpack.c.0.s8 %v428
    %v434 = vunpack.c.1.s8 %v428
    %v435 = vunpack.c.2.s8 %v428
    %v436 = vunpack.c.3.s8 %v428
    %v437 = vand.u32 %v429, 255
    %v438 = vand.u32 %v430, 255
    %v439 = vand.u32 %v431, 255
    %v440 = vand.u32 %v432, 255
    %v441 = vand.u32 %v433, 255
    %v442 = vand.u32 %v434, 255
    %v443 = vand.u32 %v435, 255
    %v444 = vand.u32 %v436, 255
    %v445 = vcvt.s32.f32 %v437
    %v446 = vcvt.s32.f32 %v438
    %v447 = vcvt.s32.f32 %v439
    %v448 = vcvt.s32.f32 %v440
    %v449 = vcvt.s32.f32 %v441
    %v450 = vcvt.s32.f32 %v442
    %v451 = vcvt.s32.f32 %v443
    %v452 = vcvt.s32.f32 %v444
    %s453 = scalar_lea.vmem [#allocation3], 112
    %v454 = vld [vmem:[%s453] sm:$0xff]
    %v455 = vld [vmem:[%s453 + $0x8] sm:$0xff]
    %v456 = vunpack.c.0.s8 %v454
    %v457 = vunpack.c.1.s8 %v454
    %v458 = vunpack.c.2.s8 %v454
    %v459 = vunpack.c.3.s8 %v454
    %v460 = vunpack.c.0.s8 %v455
    %v461 = vunpack.c.1.s8 %v455
    %v462 = vunpack.c.2.s8 %v455
    %v463 = vunpack.c.3.s8 %v455
    %v464 = vand.u32 %v456, 255
    %v465 = vand.u32 %v457, 255
    %v466 = vand.u32 %v458, 255
    %v467 = vand.u32 %v459, 255
    %v468 = vand.u32 %v460, 255
    %v469 = vand.u32 %v461, 255
    %v470 = vand.u32 %v462, 255
    %v471 = vand.u32 %v463, 255
    %v472 = vcvt.s32.f32 %v464
    %v473 = vcvt.s32.f32 %v465
    %v474 = vcvt.s32.f32 %v466
    %v475 = vcvt.s32.f32 %v467
    %v476 = vcvt.s32.f32 %v468
    %v477 = vcvt.s32.f32 %v469
    %v478 = vcvt.s32.f32 %v470
    %v479 = vcvt.s32.f32 %v471
    %s480 = scalar_lea.vmem [#allocation3], 128
    %v481 = vld [vmem:[%s480] sm:$0xff]
    %v482 = vld [vmem:[%s480 + $0x8] sm:$0xff]
    %v483 = vunpack.c.0.s8 %v481
    %v484 = vunpack.c.1.s8 %v481
    %v485 = vunpack.c.2.s8 %v481
    %v486 = vunpack.c.3.s8 %v481
    %v487 = vunpack.c.0.s8 %v482
    %v488 = vunpack.c.1.s8 %v482
    %v489 = vunpack.c.2.s8 %v482
    %v490 = vunpack.c.3.s8 %v482
    %v491 = vand.u32 %v483, 255
    %v492 = vand.u32 %v484, 255
    %v493 = vand.u32 %v485, 255
    %v494 = vand.u32 %v486, 255
    %v495 = vand.u32 %v487, 255
    %v496 = vand.u32 %v488, 255
    %v497 = vand.u32 %v489, 255
    %v498 = vand.u32 %v490, 255
    %v499 = vcvt.s32.f32 %v491
    %v500 = vcvt.s32.f32 %v492
    %v501 = vcvt.s32.f32 %v493
    %v502 = vcvt.s32.f32 %v494
    %v503 = vcvt.s32.f32 %v495
    %v504 = vcvt.s32.f32 %v496
    %v505 = vcvt.s32.f32 %v497
    %v506 = vcvt.s32.f32 %v498
    %v507 = vmul.f32 %v445, 19595.0
    %v508 = vmul.f32 %v446, 19595.0
    %v509 = vmul.f32 %v447, 19595.0
    %v510 = vmul.f32 %v448, 19595.0
    %v511 = vmul.f32 %v449, 19595.0
    %v512 = vmul.f32 %v450, 19595.0
    %v513 = vmul.f32 %v451, 19595.0
    %v514 = vmul.f32 %v452, 19595.0
    %v515 = vmul.f32 %v472, 38470.0
    %v516 = vmul.f32 %v473, 38470.0
    %v517 = vmul.f32 %v474, 38470.0
    %v518 = vmul.f32 %v475, 38470.0
    %v519 = vmul.f32 %v476, 38470.0
    %v520 = vmul.f32 %v477, 38470.0
    %v521 = vmul.f32 %v478, 38470.0
    %v522 = vmul.f32 %v479, 38470.0
    %v523 = vadd.f32 %v507, %v515
    %v524 = vadd.f32 %v508, %v516
    %v525 = vadd.f32 %v509, %v517
    %v526 = vadd.f32 %v510, %v518
    %v527 = vadd.f32 %v511, %v519
    %v528 = vadd.f32 %v512, %v520
    %v529 = vadd.f32 %v513, %v521
    %v530 = vadd.f32 %v514, %v522
    %v531 = vmul.f32 %v499, 7471.0
    %v532 = vmul.f32 %v500, 7471.0
    %v533 = vmul.f32 %v501, 7471.0
    %v534 = vmul.f32 %v502, 7471.0
    %v535 = vmul.f32 %v503, 7471.0
    %v536 = vmul.f32 %v504, 7471.0
    %v537 = vmul.f32 %v505, 7471.0
    %v538 = vmul.f32 %v506, 7471.0
    %v539 = vadd.f32 %v523, %v531
    %v540 = vadd.f32 %v524, %v532
    %v541 = vadd.f32 %v525, %v533
    %v542 = vadd.f32 %v526, %v534
    %v543 = vadd.f32 %v527, %v535
    %v544 = vadd.f32 %v528, %v536
    %v545 = vadd.f32 %v529, %v537
    %v546 = vadd.f32 %v530, %v538
    %v547 = vadd.f32 %v539, 32768.0
    %v548 = vadd.f32 %v540, 32768.0
    %v549 = vadd.f32 %v541, 32768.0
    %v550 = vadd.f32 %v542, 32768.0
    %v551 = vadd.f32 %v543, 32768.0
    %v552 = vadd.f32 %v544, 32768.0
    %v553 = vadd.f32 %v545, 32768.0
    %v554 = vadd.f32 %v546, 32768.0
    %v555 = vmul.f32 %v547, 1.5258789e-05
    %v556 = vmul.f32 %v548, 1.5258789e-05
    %v557 = vmul.f32 %v549, 1.5258789e-05
    %v558 = vmul.f32 %v550, 1.5258789e-05
    %v559 = vmul.f32 %v551, 1.5258789e-05
    %v560 = vmul.f32 %v552, 1.5258789e-05
    %v561 = vmul.f32 %v553, 1.5258789e-05
    %v562 = vmul.f32 %v554, 1.5258789e-05
    %v563 = vfloor.f32 %v555
    %v564 = vfloor.f32 %v556
    %v565 = vfloor.f32 %v557
    %v566 = vfloor.f32 %v558
    %v567 = vfloor.f32 %v559
    %v568 = vfloor.f32 %v560
    %v569 = vfloor.f32 %v561
    %v570 = vfloor.f32 %v562
    %s571 = scalar_lea.vmem [#allocation2], 16
    %v572 = vld [vmem:[%s571] sm:$0xff]
    %v573 = vpack.c.bf16 %v564, %v563
    %v574 = vpack.c.bf16 %v566, %v565
    %v575 = vpack.c.bf16 %v568, %v567
    %v576 = vpack.c.bf16 %v570, %v569
    %577 = vmatprep.subr.bf16.mxu0 0
    %578 = vmatpush1.bf16.msra.mxu0 0
    %579 = vmatprep.subr.bf16.mxu0 0
    %580 = vmatpush1.bf16.msra.mxu0 0
    %581 = vmatprep.subr.bf16.mxu0 0
    %582 = vmatpush1.bf16.msra.mxu0 0
    %583 = vmatprep.subr.bf16.mxu0 0
    %584 = vmatpush1.bf16.msra.mxu0 0
    %585 = vmatprep.subr.bf16.mxu0 0
    %586 = vmatpush1.bf16.msra.mxu0 %v576
    %587 = vmatprep.subr.bf16.mxu0 0
    %588 = vmatpush1.bf16.msra.mxu0 %v575
    %589 = vmatprep.subr.bf16.mxu0 0
    %590 = vmatpush1.bf16.msra.mxu0 %v574
    %591 = vmatprep.subr.bf16.mxu0 0
    %592 = vmatpush1.bf16.msra.mxu0 %v573
    %593 = vmatprep.subr.bf16.mxu0 0
    %594 = vmatpush2.bf16.msra.mxu0 0
    %595 = vmatprep.subr.bf16.mxu0 0
    %596 = vmatpush2.bf16.msra.mxu0 0
    %597 = vmatprep.subr.bf16.mxu0 0
    %598 = vmatpush2.bf16.msra.mxu0 0
    %599 = vmatprep.subr.bf16.mxu0 0
    %600 = vmatpush2.bf16.msra.mxu0 0
    %601 = vmatprep.subr.bf16.mxu0 0
    %602 = vmatpush2.bf16.msra.mxu0 0
    %603 = vmatprep.subr.bf16.mxu0 0
    %604 = vmatpush2.bf16.msra.mxu0 0
    %605 = vmatprep.subr.bf16.mxu0 0
    %606 = vmatpush2.bf16.msra.mxu0 0
    %607 = vmatprep.subr.bf16.mxu0 0
    %608 = vmatpush2.bf16.msra.mxu0 0
    %609 = vmatprep.mubr.bf16.mxu0 0
    %610 = vmatmul.mubr.bf16.gmra.mxu0 %v189
    %v611 = vpop.f32.mrf.mxu0
    %v612 = vadd.f32 0.0, %v611
    %v613 = vpop.f32.mrf.mxu0
    %v614 = vpop.f32.mrf.mxu0
    %v615 = vpop.f32.mrf.mxu0
    %616 = vdwg.mxu0
    %v617 = vadd.f32 %v572, %v612
    %618 = vst.msk [vmem:[%s571] sm:$0xff] %vm187, %v617
    %s619 = scalar_lea.vmem [#allocation3], 144
    %v620 = vld [vmem:[%s619] sm:$0xff]
    %v621 = vld [vmem:[%s619 + $0x8] sm:$0xff]
    %v622 = vunpack.c.0.s8 %v620
    %v623 = vunpack.c.1.s8 %v620
    %v624 = vunpack.c.2.s8 %v620
    %v625 = vunpack.c.3.s8 %v620
    %v626 = vunpack.c.0.s8 %v621
    %v627 = vunpack.c.1.s8 %v621
    %v628 = vunpack.c.2.s8 %v621
    %v629 = vunpack.c.3.s8 %v621
    %v630 = vand.u32 %v622, 255
    %v631 = vand.u32 %v623, 255
    %v632 = vand.u32 %v624, 255
    %v633 = vand.u32 %v625, 255
    %v634 = vand.u32 %v626, 255
    %v635 = vand.u32 %v627, 255
    %v636 = vand.u32 %v628, 255
    %v637 = vand.u32 %v629, 255
    %v638 = vcvt.s32.f32 %v630
    %v639 = vcvt.s32.f32 %v631
    %v640 = vcvt.s32.f32 %v632
    %v641 = vcvt.s32.f32 %v633
    %v642 = vcvt.s32.f32 %v634
    %v643 = vcvt.s32.f32 %v635
    %v644 = vcvt.s32.f32 %v636
    %v645 = vcvt.s32.f32 %v637
    %s646 = scalar_lea.vmem [#allocation3], 160
    %v647 = vld [vmem:[%s646] sm:$0xff]
    %v648 = vld [vmem:[%s646 + $0x8] sm:$0xff]
    %v649 = vunpack.c.0.s8 %v647
    %v650 = vunpack.c.1.s8 %v647
    %v651 = vunpack.c.2.s8 %v647
    %v652 = vunpack.c.3.s8 %v647
    %v653 = vunpack.c.0.s8 %v648
    %v654 = vunpack.c.1.s8 %v648
    %v655 = vunpack.c.2.s8 %v648
    %v656 = vunpack.c.3.s8 %v648
    %v657 = vand.u32 %v649, 255
    %v658 = vand.u32 %v650, 255
    %v659 = vand.u32 %v651, 255
    %v660 = vand.u32 %v652, 255
    %v661 = vand.u32 %v653, 255
    %v662 = vand.u32 %v654, 255
    %v663 = vand.u32 %v655, 255
    %v664 = vand.u32 %v656, 255
    %v665 = vcvt.s32.f32 %v657
    %v666 = vcvt.s32.f32 %v658
    %v667 = vcvt.s32.f32 %v659
    %v668 = vcvt.s32.f32 %v660
    %v669 = vcvt.s32.f32 %v661
    %v670 = vcvt.s32.f32 %v662
    %v671 = vcvt.s32.f32 %v663
    %v672 = vcvt.s32.f32 %v664
    %s673 = scalar_lea.vmem [#allocation3], 176
    %v674 = vld [vmem:[%s673] sm:$0xff]
    %v675 = vld [vmem:[%s673 + $0x8] sm:$0xff]
    %v676 = vunpack.c.0.s8 %v674
    %v677 = vunpack.c.1.s8 %v674
    %v678 = vunpack.c.2.s8 %v674
    %v679 = vunpack.c.3.s8 %v674
    %v680 = vunpack.c.0.s8 %v675
    %v681 = vunpack.c.1.s8 %v675
    %v682 = vunpack.c.2.s8 %v675
    %v683 = vunpack.c.3.s8 %v675
    %v684 = vand.u32 %v676, 255
    %v685 = vand.u32 %v677, 255
    %v686 = vand.u32 %v678, 255
    %v687 = vand.u32 %v679, 255
    %v688 = vand.u32 %v680, 255
    %v689 = vand.u32 %v681, 255
    %v690 = vand.u32 %v682, 255
    %v691 = vand.u32 %v683, 255
    %v692 = vcvt.s32.f32 %v684
    %v693 = vcvt.s32.f32 %v685
    %v694 = vcvt.s32.f32 %v686
    %v695 = vcvt.s32.f32 %v687
    %v696 = vcvt.s32.f32 %v688
    %v697 = vcvt.s32.f32 %v689
    %v698 = vcvt.s32.f32 %v690
    %v699 = vcvt.s32.f32 %v691
    %v700 = vmul.f32 %v638, 19595.0
    %v701 = vmul.f32 %v639, 19595.0
    %v702 = vmul.f32 %v640, 19595.0
    %v703 = vmul.f32 %v641, 19595.0
    %v704 = vmul.f32 %v642, 19595.0
    %v705 = vmul.f32 %v643, 19595.0
    %v706 = vmul.f32 %v644, 19595.0
    %v707 = vmul.f32 %v645, 19595.0
    %v708 = vmul.f32 %v665, 38470.0
    %v709 = vmul.f32 %v666, 38470.0
    %v710 = vmul.f32 %v667, 38470.0
    %v711 = vmul.f32 %v668, 38470.0
    %v712 = vmul.f32 %v669, 38470.0
    %v713 = vmul.f32 %v670, 38470.0
    %v714 = vmul.f32 %v671, 38470.0
    %v715 = vmul.f32 %v672, 38470.0
    %v716 = vadd.f32 %v700, %v708
    %v717 = vadd.f32 %v701, %v709
    %v718 = vadd.f32 %v702, %v710
    %v719 = vadd.f32 %v703, %v711
    %v720 = vadd.f32 %v704, %v712
    %v721 = vadd.f32 %v705, %v713
    %v722 = vadd.f32 %v706, %v714
    %v723 = vadd.f32 %v707, %v715
    %v724 = vmul.f32 %v692, 7471.0
    %v725 = vmul.f32 %v693, 7471.0
    %v726 = vmul.f32 %v694, 7471.0
    %v727 = vmul.f32 %v695, 7471.0
    %v728 = vmul.f32 %v696, 7471.0
    %v729 = vmul.f32 %v697, 7471.0
    %v730 = vmul.f32 %v698, 7471.0
    %v731 = vmul.f32 %v699, 7471.0
    %v732 = vadd.f32 %v716, %v724
    %v733 = vadd.f32 %v717, %v725
    %v734 = vadd.f32 %v718, %v726
    %v735 = vadd.f32 %v719, %v727
    %v736 = vadd.f32 %v720, %v728
    %v737 = vadd.f32 %v721, %v729
    %v738 = vadd.f32 %v722, %v730
    %v739 = vadd.f32 %v723, %v731
    %v740 = vadd.f32 %v732, 32768.0
    %v741 = vadd.f32 %v733, 32768.0
    %v742 = vadd.f32 %v734, 32768.0
    %v743 = vadd.f32 %v735, 32768.0
    %v744 = vadd.f32 %v736, 32768.0
    %v745 = vadd.f32 %v737, 32768.0
    %v746 = vadd.f32 %v738, 32768.0
    %v747 = vadd.f32 %v739, 32768.0
    %v748 = vmul.f32 %v740, 1.5258789e-05
    %v749 = vmul.f32 %v741, 1.5258789e-05
    %v750 = vmul.f32 %v742, 1.5258789e-05
    %v751 = vmul.f32 %v743, 1.5258789e-05
    %v752 = vmul.f32 %v744, 1.5258789e-05
    %v753 = vmul.f32 %v745, 1.5258789e-05
    %v754 = vmul.f32 %v746, 1.5258789e-05
    %v755 = vmul.f32 %v747, 1.5258789e-05
    %v756 = vfloor.f32 %v748
    %v757 = vfloor.f32 %v749
    %v758 = vfloor.f32 %v750
    %v759 = vfloor.f32 %v751
    %v760 = vfloor.f32 %v752
    %v761 = vfloor.f32 %v753
    %v762 = vfloor.f32 %v754
    %v763 = vfloor.f32 %v755
    %s764 = scalar_lea.vmem [#allocation2], 24
    %v765 = vld [vmem:[%s764] sm:$0xff]
    %v766 = vpack.c.bf16 %v757, %v756
    %v767 = vpack.c.bf16 %v759, %v758
    %v768 = vpack.c.bf16 %v761, %v760
    %v769 = vpack.c.bf16 %v763, %v762
    %770 = vmatprep.subr.bf16.mxu0 0
    %771 = vmatpush1.bf16.msra.mxu0 0
    %772 = vmatprep.subr.bf16.mxu0 0
    %773 = vmatpush1.bf16.msra.mxu0 0
    %774 = vmatprep.subr.bf16.mxu0 0
    %775 = vmatpush1.bf16.msra.mxu0 0
    %776 = vmatprep.subr.bf16.mxu0 0
    %777 = vmatpush1.bf16.msra.mxu0 0
    %778 = vmatprep.subr.bf16.mxu0 0
    %779 = vmatpush1.bf16.msra.mxu0 %v769
    %780 = vmatprep.subr.bf16.mxu0 0
    %781 = vmatpush1.bf16.msra.mxu0 %v768
    %782 = vmatprep.subr.bf16.mxu0 0
    %783 = vmatpush1.bf16.msra.mxu0 %v767
    %784 = vmatprep.subr.bf16.mxu0 0
    %785 = vmatpush1.bf16.msra.mxu0 %v766
    %786 = vmatprep.subr.bf16.mxu0 0
    %787 = vmatpush2.bf16.msra.mxu0 0
    %788 = vmatprep.subr.bf16.mxu0 0
    %789 = vmatpush2.bf16.msra.mxu0 0
    %790 = vmatprep.subr.bf16.mxu0 0
    %791 = vmatpush2.bf16.msra.mxu0 0
    %792 = vmatprep.subr.bf16.mxu0 0
    %793 = vmatpush2.bf16.msra.mxu0 0
    %794 = vmatprep.subr.bf16.mxu0 0
    %795 = vmatpush2.bf16.msra.mxu0 0
    %796 = vmatprep.subr.bf16.mxu0 0
    %797 = vmatpush2.bf16.msra.mxu0 0
    %798 = vmatprep.subr.bf16.mxu0 0
    %799 = vmatpush2.bf16.msra.mxu0 0
    %800 = vmatprep.subr.bf16.mxu0 0
    %801 = vmatpush2.bf16.msra.mxu0 0
    %802 = vmatprep.mubr.bf16.mxu0 0
    %803 = vmatmul.mubr.bf16.gmra.mxu0 %v189
    %v804 = vpop.f32.mrf.mxu0
    %v805 = vadd.f32 0.0, %v804
    %v806 = vpop.f32.mrf.mxu0
    %v807 = vpop.f32.mrf.mxu0
    %v808 = vpop.f32.mrf.mxu0
    %809 = vdwg.mxu0
    %v810 = vadd.f32 %v765, %v805
    %811 = vst.msk [vmem:[%s764] sm:$0xff] %vm187, %v810
    // Predicated region
    $region18: #{ahash_pil.1} parent=1 // pred_check
      %p812 = pneg %p28
    $region19: #{ahash_pil.1} parent=1 // pred_check_branch
      %814 = sbr.rel (%p812) target = $region21
    $region20: #{ahash_pil.1} parent=1 // pred_region
      %v815 = vld [vmem:[#allocation2] sm:$0xff]
      %vm816 = vcmask 64512
      %v817 = vsel %vm816, %v815, 0.0
      %818 = vadd.xlane.f32.xlu0 %v817
      %v819 = vpop.xlane.xlu0 %818
      %821 = vrot.lane.b32.xlu0 %v815, 120
      %v822 = vpop.permute.xlu0 %821
      %v824 = vsel %vm816, %v822, 0.0
      %825 = vadd.xlane.f32.xlu0 %v824
      %v826 = vpop.xlane.xlu0 %825
      %827 = vrot.lane.b32.xlu0 %v815, 112
      %v828 = vpop.permute.xlu0 %827
      %v830 = vsel %vm816, %v828, 0.0
      %831 = vadd.xlane.f32.xlu0 %v830
      %v832 = vpop.xlane.xlu0 %831
      %833 = vrot.lane.b32.xlu0 %v815, 104
      %v834 = vpop.permute.xlu0 %833
      %v836 = vsel %vm816, %v834, 0.0
      %837 = vadd.xlane.f32.xlu0 %v836
      %v838 = vpop.xlane.xlu0 %837
      %839 = vrot.lane.b32.xlu0 %v815, 96
      %v840 = vpop.permute.xlu0 %839
      %v842 = vsel %vm816, %v840, 0.0
      %843 = vadd.xlane.f32.xlu0 %v842
      %v844 = vpop.xlane.xlu0 %843
      %845 = vrot.lane.b32.xlu0 %v815, 88
      %v846 = vpop.permute.xlu0 %845
      %v848 = vsel %vm816, %v846, 0.0
      %849 = vadd.xlane.f32.xlu0 %v848
      %v850 = vpop.xlane.xlu0 %849
      %851 = vrot.lane.b32.xlu0 %v815, 80
      %v852 = vpop.permute.xlu0 %851
      %v854 = vsel %vm816, %v852, 0.0
      %855 = vadd.xlane.f32.xlu0 %v854
      %v856 = vpop.xlane.xlu0 %855
      %857 = vrot.lane.b32.xlu0 %v815, 72
      %v858 = vpop.permute.xlu0 %857
      %v860 = vsel %vm816, %v858, 0.0
      %861 = vadd.xlane.f32.xlu0 %v860
      %v862 = vpop.xlane.xlu0 %861
      %vm863 = vcmask 7168
      %v864 = vsel %vm863, %v819, %v826
      %vm865 = vcmask 15360
      %v866 = vsel %vm865, %v864, %v832
      %vm867 = vcmask 23552
      %v868 = vsel %vm867, %v866, %v838
      %vm869 = vcmask 31744
      %v870 = vsel %vm869, %v868, %v844
      %vm871 = vcmask 39936
      %v872 = vsel %vm871, %v870, %v850
      %vm873 = vcmask 48128
      %v874 = vsel %vm873, %v872, %v856
      %vm875 = vcmask 56320
      %v876 = vsel %vm875, %v874, %v862
      %v877 = vmul.f32 %v876, 0.015625
      %v878 = vround.ne.pseudo %v877
      %v879 = vmax.f32 %v878, 0.0
      %v880 = vmin.f32 %v879, 255.0
      %v881 = vsel %vm816, %v880, 0.0
      %882 = vadd.xlane.f32.xlu0 %v881
      %v883 = vpop.xlane.xlu0 %882
      %v884 = vrot.slane %v883, 4
      %v885 = vadd.f32 %v883, %v884
      %v886 = vrot.slane %v885, 2
      %v887 = vadd.f32 %v885, %v886
      %v888 = vrot.slane %v887, 1
      %v889 = vadd.f32 %v887, %v888
      %s890 = vtos %v889
      %s891 = smul.f32 %s890, 0.015625
      %v892 = vstv %s891
      %vm893 = vcmp.gt.f32.partialorder %v880, %v892
      %vm894 = vmpackc.low %vm893, %vm893
      %vm895 = vmpackc.even %vm894, %vm894
      %v896 = vsel %vm895, 16843009, 0
      %vm897 = vcmask 58368
      %898 = vst.msk [vmem:[%s2] sm:$0x3] %vm897, %v896
      %v899 = vld [vmem:[%s378] sm:$0xff]
      %v900 = vsel %vm816, %v899, 0.0
      %901 = vadd.xlane.f32.xlu0 %v900
      %v902 = vpop.xlane.xlu0 %901
      %904 = vrot.lane.b32.xlu0 %v899, 120
      %v905 = vpop.permute.xlu0 %904
      %v907 = vsel %vm816, %v905, 0.0
      %908 = vadd.xlane.f32.xlu0 %v907
      %v909 = vpop.xlane.xlu0 %908
      %910 = vrot.lane.b32.xlu0 %v899, 112
      %v911 = vpop.permute.xlu0 %910
      %v913 = vsel %vm816, %v911, 0.0
      %914 = vadd.xlane.f32.xlu0 %v913
      %v915 = vpop.xlane.xlu0 %914
      %916 = vrot.lane.b32.xlu0 %v899, 104
      %v917 = vpop.permute.xlu0 %916
      %v919 = vsel %vm816, %v917, 0.0
      %920 = vadd.xlane.f32.xlu0 %v919
      %v921 = vpop.xlane.xlu0 %920
      %922 = vrot.lane.b32.xlu0 %v899, 96
      %v923 = vpop.permute.xlu0 %922
      %v925 = vsel %vm816, %v923, 0.0
      %926 = vadd.xlane.f32.xlu0 %v925
      %v927 = vpop.xlane.xlu0 %926
      %928 = vrot.lane.b32.xlu0 %v899, 88
      %v929 = vpop.permute.xlu0 %928
      %v931 = vsel %vm816, %v929, 0.0
      %932 = vadd.xlane.f32.xlu0 %v931
      %v933 = vpop.xlane.xlu0 %932
      %934 = vrot.lane.b32.xlu0 %v899, 80
      %v935 = vpop.permute.xlu0 %934
      %v937 = vsel %vm816, %v935, 0.0
      %938 = vadd.xlane.f32.xlu0 %v937
      %v939 = vpop.xlane.xlu0 %938
      %940 = vrot.lane.b32.xlu0 %v899, 72
      %v941 = vpop.permute.xlu0 %940
      %v943 = vsel %vm816, %v941, 0.0
      %944 = vadd.xlane.f32.xlu0 %v943
      %v945 = vpop.xlane.xlu0 %944
      %v946 = vsel %vm863, %v902, %v909
      %v947 = vsel %vm865, %v946, %v915
      %v948 = vsel %vm867, %v947, %v921
      %v949 = vsel %vm869, %v948, %v927
      %v950 = vsel %vm871, %v949, %v933
      %v951 = vsel %vm873, %v950, %v939
      %v952 = vsel %vm875, %v951, %v945
      %v953 = vmul.f32 %v952, 0.015625
      %v954 = vround.ne.pseudo %v953
      %v955 = vmax.f32 %v954, 0.0
      %v956 = vmin.f32 %v955, 255.0
      %v957 = vsel %vm816, %v956, 0.0
      %958 = vadd.xlane.f32.xlu0 %v957
      %v959 = vpop.xlane.xlu0 %958
      %v960 = vrot.slane %v959, 4
      %v961 = vadd.f32 %v959, %v960
      %v962 = vrot.slane %v961, 2
      %v963 = vadd.f32 %v961, %v962
      %v964 = vrot.slane %v963, 1
      %v965 = vadd.f32 %v963, %v964
      %s966 = vtos %v965
      %s967 = smul.f32 %s966, 0.015625
      %v968 = vstv %s967
      %vm969 = vcmp.gt.f32.partialorder %v956, %v968
      %vm970 = vmpackc.low %vm969, %vm969
      %vm971 = vmpackc.even %vm970, %vm970
      %v972 = vsel %vm971, 16843009, 0
      %s973 = scalar_lea.vmem %s2, 2
      %974 = vst.msk [vmem:[%s973] sm:$0x3] %vm897, %v972
      %v975 = vld [vmem:[%s571] sm:$0xff]
      %v976 = vsel %vm816, %v975, 0.0
      %977 = vadd.xlane.f32.xlu0 %v976
      %v978 = vpop.xlane.xlu0 %977
      %980 = vrot.lane.b32.xlu0 %v975, 120
      %v981 = vpop.permute.xlu0 %980
      %v983 = vsel %vm816, %v981, 0.0
      %984 = vadd.xlane.f32.xlu0 %v983
      %v985 = vpop.xlane.xlu0 %984
      %986 = vrot.lane.b32.xlu0 %v975, 112
      %v987 = vpop.permute.xlu0 %986
      %v989 = vsel %vm816, %v987, 0.0
      %990 = vadd.xlane.f32.xlu0 %v989
      %v991 = vpop.xlane.xlu0 %990
      %992 = vrot.lane.b32.xlu0 %v975, 104
      %v993 = vpop.permute.xlu0 %992
      %v995 = vsel %vm816, %v993, 0.0
      %996 = vadd.xlane.f32.xlu0 %v995
      %v997 = vpop.xlane.xlu0 %996
      %998 = vrot.lane.b32.xlu0 %v975, 96
      %v999 = vpop.permute.xlu0 %998
      %v1001 = vsel %vm816, %v999, 0.0
      %1002 = vadd.xlane.f32.xlu0 %v1001
      %v1003 = vpop.xlane.xlu0 %1002
      %1004 = vrot.lane.b32.xlu0 %v975, 88
      %v1005 = vpop.permute.xlu0 %1004
      %v1007 = vsel %vm816, %v1005, 0.0
      %1008 = vadd.xlane.f32.xlu0 %v1007
      %v1009 = vpop.xlane.xlu0 %1008
      %1010 = vrot.lane.b32.xlu0 %v975, 80
      %v1011 = vpop.permute.xlu0 %1010
      %v1013 = vsel %vm816, %v1011, 0.0
      %1014 = vadd.xlane.f32.xlu0 %v1013
      %v1015 = vpop.xlane.xlu0 %1014
      %1016 = vrot.lane.b32.xlu0 %v975, 72
      %v1017 = vpop.permute.xlu0 %1016
      %v1019 = vsel %vm816, %v1017, 0.0
      %1020 = vadd.xlane.f32.xlu0 %v1019
      %v1021 = vpop.xlane.xlu0 %1020
      %v1022 = vsel %vm863, %v978, %v985
      %v1023 = vsel %vm865, %v1022, %v991
      %v1024 = vsel %vm867, %v1023, %v997
      %v1025 = vsel %vm869, %v1024, %v1003
      %v1026 = vsel %vm871, %v1025, %v1009
      %v1027 = vsel %vm873, %v1026, %v1015
      %v1028 = vsel %vm875, %v1027, %v1021
      %v1029 = vmul.f32 %v1028, 0.015625
      %v1030 = vround.ne.pseudo %v1029
      %v1031 = vmax.f32 %v1030, 0.0
      %v1032 = vmin.f32 %v1031, 255.0
      %v1033 = vsel %vm816, %v1032, 0.0
      %1034 = vadd.xlane.f32.xlu0 %v1033
      %v1035 = vpop.xlane.xlu0 %1034
      %v1036 = vrot.slane %v1035, 4
      %v1037 = vadd.f32 %v1035, %v1036
      %v1038 = vrot.slane %v1037, 2
      %v1039 = vadd.f32 %v1037, %v1038
      %v1040 = vrot.slane %v1039, 1
      %v1041 = vadd.f32 %v1039, %v1040
      %s1042 = vtos %v1041
      %s1043 = smul.f32 %s1042, 0.015625
      %v1044 = vstv %s1043
      %vm1045 = vcmp.gt.f32.partialorder %v1032, %v1044
      %vm1046 = vmpackc.low %vm1045, %vm1045
      %vm1047 = vmpackc.even %vm1046, %vm1046
      %v1048 = vsel %vm1047, 16843009, 0
      %s1049 = scalar_lea.vmem %s2, 4
      %1050 = vst.msk [vmem:[%s1049] sm:$0x3] %vm897, %v1048
      %v1051 = vld [vmem:[%s764] sm:$0xff]
      %v1052 = vsel %vm816, %v1051, 0.0
      %1053 = vadd.xlane.f32.xlu0 %v1052
      %v1054 = vpop.xlane.xlu0 %1053
      %1056 = vrot.lane.b32.xlu0 %v1051, 120
      %v1057 = vpop.permute.xlu0 %1056
      %v1059 = vsel %vm816, %v1057, 0.0
      %1060 = vadd.xlane.f32.xlu0 %v1059
      %v1061 = vpop.xlane.xlu0 %1060
      %1062 = vrot.lane.b32.xlu0 %v1051, 112
      %v1063 = vpop.permute.xlu0 %1062
      %v1065 = vsel %vm816, %v1063, 0.0
      %1066 = vadd.xlane.f32.xlu0 %v1065
      %v1067 = vpop.xlane.xlu0 %1066
      %1068 = vrot.lane.b32.xlu0 %v1051, 104
      %v1069 = vpop.permute.xlu0 %1068
      %v1071 = vsel %vm816, %v1069, 0.0
      %1072 = vadd.xlane.f32.xlu0 %v1071
      %v1073 = vpop.xlane.xlu0 %1072
      %1074 = vrot.lane.b32.xlu0 %v1051, 96
      %v1075 = vpop.permute.xlu0 %1074
      %v1077 = vsel %vm816, %v1075, 0.0
      %1078 = vadd.xlane.f32.xlu0 %v1077
      %v1079 = vpop.xlane.xlu0 %1078
      %1080 = vrot.lane.b32.xlu0 %v1051, 88
      %v1081 = vpop.permute.xlu0 %1080
      %v1083 = vsel %vm816, %v1081, 0.0
      %1084 = vadd.xlane.f32.xlu0 %v1083
      %v1085 = vpop.xlane.xlu0 %1084
      %1086 = vrot.lane.b32.xlu0 %v1051, 80
      %v1087 = vpop.permute.xlu0 %1086
      %v1089 = vsel %vm816, %v1087, 0.0
      %1090 = vadd.xlane.f32.xlu0 %v1089
      %v1091 = vpop.xlane.xlu0 %1090
      %1092 = vrot.lane.b32.xlu0 %v1051, 72
      %v1093 = vpop.permute.xlu0 %1092
      %v1095 = vsel %vm816, %v1093, 0.0
      %1096 = vadd.xlane.f32.xlu0 %v1095
      %v1097 = vpop.xlane.xlu0 %1096
      %v1098 = vsel %vm863, %v1054, %v1061
      %v1099 = vsel %vm865, %v1098, %v1067
      %v1100 = vsel %vm867, %v1099, %v1073
      %v1101 = vsel %vm869, %v1100, %v1079
      %v1102 = vsel %vm871, %v1101, %v1085
      %v1103 = vsel %vm873, %v1102, %v1091
      %v1104 = vsel %vm875, %v1103, %v1097
      %v1105 = vmul.f32 %v1104, 0.015625
      %v1106 = vround.ne.pseudo %v1105
      %v1107 = vmax.f32 %v1106, 0.0
      %v1108 = vmin.f32 %v1107, 255.0
      %v1109 = vsel %vm816, %v1108, 0.0
      %1110 = vadd.xlane.f32.xlu0 %v1109
      %v1111 = vpop.xlane.xlu0 %1110
      %v1112 = vrot.slane %v1111, 4
      %v1113 = vadd.f32 %v1111, %v1112
      %v1114 = vrot.slane %v1113, 2
      %v1115 = vadd.f32 %v1113, %v1114
      %v1116 = vrot.slane %v1115, 1
      %v1117 = vadd.f32 %v1115, %v1116
      %s1118 = vtos %v1117
      %s1119 = smul.f32 %s1118, 0.015625
      %v1120 = vstv %s1119
      %vm1121 = vcmp.gt.f32.partialorder %v1108, %v1120
      %vm1122 = vmpackc.low %vm1121, %vm1121
      %vm1123 = vmpackc.even %vm1122, %vm1122
      %v1124 = vsel %vm1123, 16843009, 0
      %s1125 = scalar_lea.vmem %s2, 6
      %1126 = vst.msk [vmem:[%s1125] sm:$0x3] %vm897, %v1124
    $region21: #{ahash_pil.1} parent=1 // pred_fallthru
      _
    // Predicated region
    $region22: #{ahash_pil.1} parent=1 // pred_check
      _
    $region23: #{ahash_pil.1} parent=1 // pred_check_branch
      %1128 = sbr.rel (0) target = $region25
    $region24: #{ahash_pil.1} parent=1 // pred_region
      _
    $region25: #{ahash_pil.1} parent=1 // pred_fallthru
      _
    // Predicated region
    $region26: #{ahash_pil.1} parent=1 // pred_check
      _
    $region27: #{ahash_pil.1} parent=1 // pred_check_branch
      %1130 = sbr.rel (0) target = $region29
    $region28: #{ahash_pil.1} parent=1 // pred_region
      _
    $region29: #{ahash_pil.1} parent=1 // pred_fallthru
      _
    %1131 = vsyncpa [#allocation4], 1

</llo_original>
